<compile_context>
chip_gen: v5e
topology: v5e:2x2
jax: 0.10.0
libtpu: 0.0.40
codegen_flags: <defaults>
</compile_context>

<pallas_src>
import functools
import math

import numpy as np
import jax
import jax.numpy as jnp
from jax import lax
from jax.experimental import pallas as pl
from jax.experimental.pallas import tpu as pltpu

_LANES = 128


# --------------------------------------------------------------------- helpers
def _layernorm(h, g, b, eps=1e-5):
    mu = jnp.mean(h, axis=-1, keepdims=True)
    var = jnp.mean((h - mu) ** 2, axis=-1, keepdims=True)
    return (h - mu) * lax.rsqrt(var + eps) * g + b


# -------------------------------------------------------------- weight packing
def weight_layout(C, F, D, FFN, NSHAPE):
    """Row layout of the single packed (rows, 128) f32 weight slab."""
    assert max(C + 1, D, 3 * D, FFN, NSHAPE) <= _LANES
    layout = {}
    r = 0

    def add(name, rows, cols):
        nonlocal r
        layout[name] = (r, rows, cols)
        r += rows

    # matrices (row starts are all multiples of 8 -> tile-aligned slices)
    add("w_conv_aug", F, C + 1)     # 1x1 conv weight | conv bias (ones-row trick)
    add("w_emb", F, D)
    add("w_qkv", D, 3 * D)          # fused Wq|Wk|Wv
    add("w_o", D, D)
    add("w_ffn1", D, FFN)
    add("w_ffn2", FFN, D)
    add("w_shape", D, NSHAPE)
    # bias / LN rows (one row each)
    for name, cols in (("b_emb", D), ("b_qkv", 3 * D), ("b_o", D),
                       ("ln1_g", D), ("ln1_b", D),
                       ("b_ffn1", FFN), ("b_ffn2", D),
                       ("ln2_g", D), ("ln2_b", D),
                       ("b_head", NSHAPE)):
        add(name, 1, cols)
    total_rows = ((r + 7) // 8) * 8
    return layout, total_rows


def pack_weights(params, C, F, D, FFN, NSHAPE):
    """One-time host-side packing of every weight/bias into one VMEM slab."""
    layout, rows = weight_layout(C, F, D, FFN, NSHAPE)
    slab = jnp.zeros((rows, _LANES), jnp.float32)

    def put(s, name, mat):
        r0, nr, nc = layout[name]
        return s.at[r0:r0 + nr, 0:nc].set(
            jnp.asarray(mat, jnp.float32).reshape(nr, nc))

    slab = put(slab, "w_conv_aug",
               jnp.concatenate([params["w_conv"], params["b_conv"]], axis=1))
    slab = put(slab, "w_emb", params["w_emb"])
    slab = put(slab, "w_qkv",
               jnp.concatenate([params["wq"], params["wk"], params["wv"]], axis=1))
    slab = put(slab, "w_o", params["wo"])
    slab = put(slab, "w_ffn1", params["w1"])
    slab = put(slab, "w_ffn2", params["w2"])
    slab = put(slab, "w_shape", params["w_shape"])
    slab = put(slab, "b_emb", params["b_emb"])
    slab = put(slab, "b_qkv",
               jnp.concatenate([params["bq"], params["bk"], params["bv"]], axis=1))
    slab = put(slab, "b_o", params["bo"])
    slab = put(slab, "ln1_g", params["ln1_g"])
    slab = put(slab, "ln1_b", params["ln1_b"])
    slab = put(slab, "b_ffn1", params["b1"])
    slab = put(slab, "b_ffn2", params["b2"])
    slab = put(slab, "ln2_g", params["ln2_g"])
    slab = put(slab, "ln2_b", params["ln2_b"])
    # shape-head bias and the SMPL mean_shape buffer are both constants added
    # to the same output -> fold into a single head-bias row.
    slab = put(slab, "b_head", params["b_shape"] + params["mean_shape"])
    return slab, layout


# ---------------------------------------------------------------- fused kernel
def fused_forward_kernel(x_ref, w_ref, c_ref, o_ref, *,
                         layout, n_img, hw, d_model):
    f32 = jnp.float32

    def blk(name):
        r0, nr, nc = layout[name]
        return w_ref[r0:r0 + nr, 0:nc]

    def blk_full(name):            # all 128 lanes (zero padded) -> lane-dense head
        r0, nr, _ = layout[name]
        return w_ref[r0:r0 + nr, :]

    # ---- backbone: 1x1 conv (+bias via ones-row of x) as ONE MXU matmul,
    #      ReLU, per-image global average pool over the lane axis. -------------
    h = jnp.dot(blk("w_conv_aug"), x_ref[...],
                preferred_element_type=f32)                     # (F, n_img*hw)
    h = jnp.maximum(h, 0.0)
    cols = [jnp.sum(h[:, i * hw:(i + 1) * hw], axis=1, keepdims=True)
            for i in range(n_img)]                              # lane-aligned slices
    pooled_t = jnp.concatenate(cols, axis=1) * (1.0 / hw)       # (F, n_img)

    # ---- linear embedding: contract F (dim 0 of both operands, no transpose) -
    emb = lax.dot_general(pooled_t, blk("w_emb"),
                          dimension_numbers=(((0,), (0,)), ((), ())),
                          preferred_element_type=f32) + blk("b_emb")   # (n_img, D)

    # ---- transformer encoder layer (single head), fused QKV projection ------
    qkv = jnp.dot(emb, blk("w_qkv"), preferred_element_type=f32) + blk("b_qkv")
    q = qkv[:, 0:d_model]
    k = qkv[:, d_model:2 * d_model]
    v = qkv[:, 2 * d_model:3 * d_model]

    scores = lax.dot_general(q, k, dimension_numbers=(((1,), (1,)), ((), ())),
                             preferred_element_type=f32)
    scores = scores * (1.0 / math.sqrt(d_model))
    scores = scores + c_ref[0:n_img, 0:n_img]          # additive block-diag mask
    scores = scores - jnp.max(scores, axis=-1, keepdims=True)
    e = jnp.exp(scores)
    attn = e * pl.reciprocal(jnp.sum(e, axis=-1, keepdims=True), approx=False)

    ctx = jnp.dot(attn, v, preferred_element_type=f32)
    attn_out = jnp.dot(ctx, blk("w_o"), preferred_element_type=f32) + blk("b_o")
    h1 = _layernorm(emb + attn_out, blk("ln1_g"), blk("ln1_b"))          # post-LN

    ffn = jnp.dot(h1, blk("w_ffn1"), preferred_element_type=f32) + blk("b_ffn1")
    ffn = jnp.maximum(ffn, 0.0)
    ffn = jnp.dot(ffn, blk("w_ffn2"), preferred_element_type=f32) + blk("b_ffn2")
    enc = _layernorm(h1 + ffn, blk("ln2_g"), blk("ln2_b"))               # (n_img, D)

    # ---- aggregation (per-sequence mean as a segment matmul) + shape head ----
    out_rows = o_ref.shape[0]
    seg = c_ref[n_img:n_img + out_rows, 0:n_img]       # (out_rows, n_img); rows >= n_batch are 0
    agg = jnp.dot(seg, enc, preferred_element_type=f32)                  # (out_rows, D)
    # Full 128-lane (zero-padded) weight/bias views -> unmasked full-tile store.
    o_ref[...] = (jnp.dot(agg, blk_full("w_shape"), preferred_element_type=f32)
                  + blk_full("b_head"))


# -------------------------------------------------------------------- wrapper
def aggregation_shape_estimator(x_nchw, n_batch, w_packed, layout, n_shape):
    """Forward pass.  x_nchw: (n_img_in_batch, C, H, W) float32 -> (n_batch, n_shape)."""
    N, C, H, W = x_nchw.shape
    hw = H * W
    seq_len = N // n_batch
    d_model = layout["w_emb"][2]
    assert N <= _LANES

    # Channel-major x slab + ones-row (folds the conv bias into the matmul).
    # The transpose is a tiny (32 KiB) XLA op outside the kernel; inside, the
    # conv is a single (F, C+1) @ (C+1, N*hw) MXU matmul with lane axis N*hw.
    x_cm = jnp.transpose(x_nchw, (1, 0, 2, 3)).reshape(C, N * hw)
    x_aug = jnp.concatenate([x_cm, jnp.ones((1, N * hw), jnp.float32)], axis=0)

    out_rows = max(8, ((n_batch + 7) // 8) * 8)          # lane/sublane-dense output tile

    # Trace-time constants (numpy): additive block-diagonal attention mask and
    # the per-sequence averaging matrix, packed into one tiny buffer.
    seq_id = np.arange(N) // seq_len
    mask = np.where(seq_id[:, None] == seq_id[None, :], 0.0, -1e30).astype(np.float32)
    seg = np.zeros((out_rows, N), np.float32)
    for b in range(n_batch):
        seg[b, b * seq_len:(b + 1) * seq_len] = 1.0 / seq_len
    crows = ((N + out_rows + 7) // 8) * 8
    const = np.zeros((crows, _LANES), np.float32)
    const[0:N, 0:N] = mask
    const[N:N + out_rows, 0:N] = seg
    const = jnp.asarray(const)

    kernel = functools.partial(fused_forward_kernel, layout=layout,
                               n_img=N, hw=hw, d_model=d_model)
    vmem = functools.partial(pl.BlockSpec, memory_space=pltpu.MemorySpace.VMEM)

    # Single fused grid-less program (3 input DMAs, 1 output DMA).
    # NOTE: on v7x the two sequences could be split over the 2 TensorCores with
    # grid=(n_batch,) "parallel"; kept fused here since v5e/v6e have 1 TC and
    # the per-grid-step overhead would exceed the per-sequence compute.
    out = pl.pallas_call(
        kernel,
        out_shape=jax.ShapeDtypeStruct((out_rows, _LANES), jnp.float32),
        in_specs=[vmem(), vmem(), vmem()],
        out_specs=vmem(),
    )(x_aug, w_packed, const)
    return out[:n_batch, :n_shape]


# --------------------------------------------------------------------- params
def init_params(key, C, F, D, FFN, N_SHAPE):
    ks = jax.random.split(key, 16)

    def lin(k, fan_in, shape):
        return jax.random.normal(k, shape, jnp.float32) / math.sqrt(fan_in)

    return {
        # backbone 1x1 conv, stored PyTorch-style (out_ch, in_ch)
        "w_conv": lin(ks[0], C, (F, C)),
        "b_conv": jnp.zeros((F, 1), jnp.float32),
        # linear embedding
        "w_emb": lin(ks[1], F, (F, D)),
        "b_emb": jnp.zeros((1, D), jnp.float32),
        # transformer encoder layer (single head)
        "wq": lin(ks[2], D, (D, D)), "bq": jnp.zeros((1, D), jnp.float32),
        "wk": lin(ks[3], D, (D, D)), "bk": jnp.zeros((1, D), jnp.float32),
        "wv": lin(ks[4], D, (D, D)), "bv": jnp.zeros((1, D), jnp.float32),
        "wo": lin(ks[5], D, (D, D)), "bo": jnp.zeros((1, D), jnp.float32),
        "ln1_g": jnp.ones((1, D), jnp.float32),
        "ln1_b": jnp.zeros((1, D), jnp.float32),
        "w1": lin(ks[6], D, (D, FFN)), "b1": jnp.zeros((1, FFN), jnp.float32),
        "w2": lin(ks[7], FFN, (FFN, D)), "b2": jnp.zeros((1, D), jnp.float32),
        "ln2_g": jnp.ones((1, D), jnp.float32),
        "ln2_b": jnp.zeros((1, D), jnp.float32),
        # shape extraction head
        "w_shape": lin(ks[8], D, (D, N_SHAPE)),
        "b_shape": jnp.zeros((1, N_SHAPE), jnp.float32),
        # TODO(synk): SMPL mean_shape comes from an .npz buffer in the original
        # module; a synthetic buffer is used here instead of reading files.
        "mean_shape": 0.1 * jax.random.normal(ks[9], (1, N_SHAPE), jnp.float32),
    }


if __name__ == "__main__":
    # sequences of frames -> SMPL betas
    n_batch, seq_len = 2, 4
    n_img_in_batch = n_batch * seq_len          # 8
    C, H, W = 4, 16, 16
    F, D, FFN, N_SHAPE = 32, 32, 64, 10

    key = jax.random.PRNGKey(0)
    x = jax.random.normal(key, (n_img_in_batch, C, H, W), jnp.float32)
    params = init_params(jax.random.PRNGKey(1), C, F, D, FFN, N_SHAPE)
    w_packed, layout = pack_weights(params, C, F, D, FFN, N_SHAPE)

    out = aggregation_shape_estimator(x, n_batch, w_packed, layout, N_SHAPE)
    out = jax.block_until_ready(out)
    assert out.shape == (n_batch, N_SHAPE)
    assert out.dtype == jnp.float32
    print("KERNEL_OK")
</pallas_src>

<mosaic_0001>
module attributes {stable_mosaic.version = 11 : i64} {
  func.func @fused_forward_kernel(%arg0: memref<5x2048xf32, #tpu.memory_space<vmem>>, %arg1: memref<272x128xf32, #tpu.memory_space<vmem>>, %arg2: memref<16x128xf32, #tpu.memory_space<vmem>>, %arg3: memref<8x128xf32, #tpu.memory_space<vmem>>) attributes {dimension_semantics = [], scalar_prefetch = 0 : i64, scratch_operands = 0 : i64, tpu.core_type = #tpu.core_type<tc>} {
    %c0 = arith.constant 0 : index
    %c0_0 = arith.constant 0 : index
    %0 = vector.load %arg1[%c0, %c0_0] : memref<272x128xf32, #tpu.memory_space<vmem>>, vector<32x5xf32>
    %c0_1 = arith.constant 0 : index
    %c0_2 = arith.constant 0 : index
    %1 = vector.load %arg0[%c0_1, %c0_2] : memref<5x2048xf32, #tpu.memory_space<vmem>>, vector<5x2048xf32>
    %cst = arith.constant dense<0.000000e+00> : vector<32x2048xf32>
    %2 = tpu.matmul %0, %1, %cst {dimension_numbers = #tpu.dot_dimension_numbers<[1], [0], [0], [1], [0, 0, 1, 1], [], []>} : vector<32x5xf32>, vector<5x2048xf32>, vector<32x2048xf32> -> vector<32x2048xf32>
    %cst_3 = arith.constant 0.000000e+00 : f32
    %3 = vector.broadcast %cst_3 : f32 to vector<32x2048xf32>
    %4 = arith.maximumf %2, %3 : vector<32x2048xf32>
    %5 = vector.extract_strided_slice %4 {offsets = [0, 0], sizes = [32, 256], strides = [1, 1]} : vector<32x2048xf32> to vector<32x256xf32>
    %cst_4 = arith.constant dense<0.000000e+00> : vector<32xf32>
    %6 = vector.multi_reduction <add>, %5, %cst_4 [1] : vector<32x256xf32> to vector<32xf32>
    %7 = vector.shape_cast %6 : vector<32xf32> to vector<32x1xf32>
    %8 = vector.extract_strided_slice %4 {offsets = [0, 256], sizes = [32, 256], strides = [1, 1]} : vector<32x2048xf32> to vector<32x256xf32>
    %cst_5 = arith.constant dense<0.000000e+00> : vector<32xf32>
    %9 = vector.multi_reduction <add>, %8, %cst_5 [1] : vector<32x256xf32> to vector<32xf32>
    %10 = vector.shape_cast %9 : vector<32xf32> to vector<32x1xf32>
    %11 = vector.extract_strided_slice %4 {offsets = [0, 512], sizes = [32, 256], strides = [1, 1]} : vector<32x2048xf32> to vector<32x256xf32>
    %cst_6 = arith.constant dense<0.000000e+00> : vector<32xf32>
    %12 = vector.multi_reduction <add>, %11, %cst_6 [1] : vector<32x256xf32> to vector<32xf32>
    %13 = vector.shape_cast %12 : vector<32xf32> to vector<32x1xf32>
    %14 = vector.extract_strided_slice %4 {offsets = [0, 768], sizes = [32, 256], strides = [1, 1]} : vector<32x2048xf32> to vector<32x256xf32>
    %cst_7 = arith.constant dense<0.000000e+00> : vector<32xf32>
    %15 = vector.multi_reduction <add>, %14, %cst_7 [1] : vector<32x256xf32> to vector<32xf32>
    %16 = vector.shape_cast %15 : vector<32xf32> to vector<32x1xf32>
    %17 = vector.extract_strided_slice %4 {offsets = [0, 1024], sizes = [32, 256], strides = [1, 1]} : vector<32x2048xf32> to vector<32x256xf32>
    %cst_8 = arith.constant dense<0.000000e+00> : vector<32xf32>
    %18 = vector.multi_reduction <add>, %17, %cst_8 [1] : vector<32x256xf32> to vector<32xf32>
    %19 = vector.shape_cast %18 : vector<32xf32> to vector<32x1xf32>
    %20 = vector.extract_strided_slice %4 {offsets = [0, 1280], sizes = [32, 256], strides = [1, 1]} : vector<32x2048xf32> to vector<32x256xf32>
    %cst_9 = arith.constant dense<0.000000e+00> : vector<32xf32>
    %21 = vector.multi_reduction <add>, %20, %cst_9 [1] : vector<32x256xf32> to vector<32xf32>
    %22 = vector.shape_cast %21 : vector<32xf32> to vector<32x1xf32>
    %23 = vector.extract_strided_slice %4 {offsets = [0, 1536], sizes = [32, 256], strides = [1, 1]} : vector<32x2048xf32> to vector<32x256xf32>
    %cst_10 = arith.constant dense<0.000000e+00> : vector<32xf32>
    %24 = vector.multi_reduction <add>, %23, %cst_10 [1] : vector<32x256xf32> to vector<32xf32>
    %25 = vector.shape_cast %24 : vector<32xf32> to vector<32x1xf32>
    %26 = vector.extract_strided_slice %4 {offsets = [0, 1792], sizes = [32, 256], strides = [1, 1]} : vector<32x2048xf32> to vector<32x256xf32>
    %cst_11 = arith.constant dense<0.000000e+00> : vector<32xf32>
    %27 = vector.multi_reduction <add>, %26, %cst_11 [1] : vector<32x256xf32> to vector<32xf32>
    %28 = vector.shape_cast %27 : vector<32xf32> to vector<32x1xf32>
    %29 = tpu.concatenate %7, %10, %13, %16, %19, %22, %25, %28 in 1 : vector<32x1xf32>, vector<32x1xf32>, vector<32x1xf32>, vector<32x1xf32>, vector<32x1xf32>, vector<32x1xf32>, vector<32x1xf32>, vector<32x1xf32> -> vector<32x8xf32>
    %cst_12 = arith.constant 3.906250e-03 : f32
    %30 = vector.broadcast %cst_12 : f32 to vector<32x8xf32>
    %31 = arith.mulf %29, %30 : vector<32x8xf32>
    %c32 = arith.constant 32 : index
    %c0_13 = arith.constant 0 : index
    %32 = vector.load %arg1[%c32, %c0_13] : memref<272x128xf32, #tpu.memory_space<vmem>>, vector<32x32xf32>
    %cst_14 = arith.constant dense<0.000000e+00> : vector<8x32xf32>
    %33 = tpu.matmul %31, %32, %cst_14 {dimension_numbers = #tpu.dot_dimension_numbers<[0], [0], [1], [1], [0, 1, 1, 1], [], []>} : vector<32x8xf32>, vector<32x32xf32>, vector<8x32xf32> -> vector<8x32xf32>
    %c256 = arith.constant 256 : index
    %c0_15 = arith.constant 0 : index
    %34 = vector.load %arg1[%c256, %c0_15] : memref<272x128xf32, #tpu.memory_space<vmem>>, vector<1x32xf32>
    %35 = vector.broadcast %34 : vector<1x32xf32> to vector<8x32xf32>
    %36 = arith.addf %33, %35 : vector<8x32xf32>
    %c64 = arith.constant 64 : index
    %c0_16 = arith.constant 0 : index
    %37 = vector.load %arg1[%c64, %c0_16] : memref<272x128xf32, #tpu.memory_space<vmem>>, vector<32x96xf32>
    %cst_17 = arith.constant dense<0.000000e+00> : vector<8x96xf32>
    %38 = tpu.matmul %36, %37, %cst_17 {dimension_numbers = #tpu.dot_dimension_numbers<[1], [0], [0], [1], [0, 0, 1, 1], [], []>} : vector<8x32xf32>, vector<32x96xf32>, vector<8x96xf32> -> vector<8x96xf32>
    %c257 = arith.constant 257 : index
    %c0_18 = arith.constant 0 : index
    %39 = vector.load %arg1[%c257, %c0_18] : memref<272x128xf32, #tpu.memory_space<vmem>>, vector<1x96xf32>
    %40 = vector.broadcast %39 : vector<1x96xf32> to vector<8x96xf32>
    %41 = arith.addf %38, %40 : vector<8x96xf32>
    %42 = vector.extract_strided_slice %41 {offsets = [0, 0], sizes = [8, 32], strides = [1, 1]} : vector<8x96xf32> to vector<8x32xf32>
    %43 = vector.extract_strided_slice %41 {offsets = [0, 32], sizes = [8, 32], strides = [1, 1]} : vector<8x96xf32> to vector<8x32xf32>
    %44 = vector.extract_strided_slice %41 {offsets = [0, 64], sizes = [8, 32], strides = [1, 1]} : vector<8x96xf32> to vector<8x32xf32>
    %cst_19 = arith.constant dense<0.000000e+00> : vector<8x8xf32>
    %45 = tpu.matmul %42, %43, %cst_19 {dimension_numbers = #tpu.dot_dimension_numbers<[1], [1], [0], [0], [0, 0, 1, 0], [], []>} : vector<8x32xf32>, vector<8x32xf32>, vector<8x8xf32> -> vector<8x8xf32>
    %cst_20 = arith.constant 0.176776692 : f32
    %46 = vector.broadcast %cst_20 : f32 to vector<8x8xf32>
    %47 = arith.mulf %45, %46 : vector<8x8xf32>
    %c0_21 = arith.constant 0 : index
    %c0_22 = arith.constant 0 : index
    %48 = vector.load %arg2[%c0_21, %c0_22] : memref<16x128xf32, #tpu.memory_space<vmem>>, vector<8x8xf32>
    %49 = arith.addf %47, %48 : vector<8x8xf32>
    %cst_23 = arith.constant dense<0xFF800000> : vector<8xf32>
    %50 = vector.multi_reduction <maximumf>, %49, %cst_23 [1] : vector<8x8xf32> to vector<8xf32>
    %51 = vector.shape_cast %50 : vector<8xf32> to vector<8x1xf32>
    %52 = vector.broadcast %51 : vector<8x1xf32> to vector<8x8xf32>
    %53 = arith.subf %49, %52 : vector<8x8xf32>
    %54 = math.exp %53 : vector<8x8xf32>
    %cst_24 = arith.constant dense<0.000000e+00> : vector<8xf32>
    %55 = vector.multi_reduction <add>, %54, %cst_24 [1] : vector<8x8xf32> to vector<8xf32>
    %56 = vector.shape_cast %55 : vector<8xf32> to vector<8x1xf32>
    %57 = tpu.reciprocal %56 : vector<8x1xf32> -> vector<8x1xf32>
    %58 = vector.broadcast %57 : vector<8x1xf32> to vector<8x8xf32>
    %59 = arith.mulf %54, %58 : vector<8x8xf32>
    %cst_25 = arith.constant dense<0.000000e+00> : vector<8x32xf32>
    %60 = tpu.matmul %59, %44, %cst_25 {dimension_numbers = #tpu.dot_dimension_numbers<[1], [0], [0], [1], [0, 0, 1, 1], [], []>} : vector<8x8xf32>, vector<8x32xf32>, vector<8x32xf32> -> vector<8x32xf32>
    %c96 = arith.constant 96 : index
    %c0_26 = arith.constant 0 : index
    %61 = vector.load %arg1[%c96, %c0_26] : memref<272x128xf32, #tpu.memory_space<vmem>>, vector<32x32xf32>
    %cst_27 = arith.constant dense<0.000000e+00> : vector<8x32xf32>
    %62 = tpu.matmul %60, %61, %cst_27 {dimension_numbers = #tpu.dot_dimension_numbers<[1], [0], [0], [1], [0, 0, 1, 1], [], []>} : vector<8x32xf32>, vector<32x32xf32>, vector<8x32xf32> -> vector<8x32xf32>
    %c258 = arith.constant 258 : index
    %c0_28 = arith.constant 0 : index
    %63 = vector.load %arg1[%c258, %c0_28] : memref<272x128xf32, #tpu.memory_space<vmem>>, vector<1x32xf32>
    %64 = vector.broadcast %63 : vector<1x32xf32> to vector<8x32xf32>
    %65 = arith.addf %62, %64 : vector<8x32xf32>
    %66 = arith.addf %36, %65 : vector<8x32xf32>
    %c259 = arith.constant 259 : index
    %c0_29 = arith.constant 0 : index
    %67 = vector.load %arg1[%c259, %c0_29] : memref<272x128xf32, #tpu.memory_space<vmem>>, vector<1x32xf32>
    %c260 = arith.constant 260 : index
    %c0_30 = arith.constant 0 : index
    %68 = vector.load %arg1[%c260, %c0_30] : memref<272x128xf32, #tpu.memory_space<vmem>>, vector<1x32xf32>
    %cst_31 = arith.constant dense<0.000000e+00> : vector<8xf32>
    %69 = vector.multi_reduction <add>, %66, %cst_31 [1] : vector<8x32xf32> to vector<8xf32>
    %70 = vector.shape_cast %69 : vector<8xf32> to vector<8x1xf32>
    %cst_32 = arith.constant 3.200000e+01 : f32
    %71 = vector.broadcast %cst_32 : f32 to vector<8x1xf32>
    %72 = arith.divf %70, %71 : vector<8x1xf32>
    %73 = vector.broadcast %72 : vector<8x1xf32> to vector<8x32xf32>
    %74 = arith.subf %66, %73 : vector<8x32xf32>
    %75 = arith.mulf %74, %74 : vector<8x32xf32>
    %cst_33 = arith.constant dense<0.000000e+00> : vector<8xf32>
    %76 = vector.multi_reduction <add>, %75, %cst_33 [1] : vector<8x32xf32> to vector<8xf32>
    %77 = vector.shape_cast %76 : vector<8xf32> to vector<8x1xf32>
    %cst_34 = arith.constant 3.200000e+01 : f32
    %78 = vector.broadcast %cst_34 : f32 to vector<8x1xf32>
    %79 = arith.divf %77, %78 : vector<8x1xf32>
    %80 = vector.broadcast %72 : vector<8x1xf32> to vector<8x32xf32>
    %81 = arith.subf %66, %80 : vector<8x32xf32>
    %cst_35 = arith.constant 9.99999974E-6 : f32
    %82 = vector.broadcast %cst_35 : f32 to vector<8x1xf32>
    %83 = arith.addf %79, %82 : vector<8x1xf32>
    %84 = math.rsqrt %83 : vector<8x1xf32>
    %85 = vector.broadcast %84 : vector<8x1xf32> to vector<8x32xf32>
    %86 = arith.mulf %81, %85 : vector<8x32xf32>
    %87 = vector.broadcast %67 : vector<1x32xf32> to vector<8x32xf32>
    %88 = arith.mulf %86, %87 : vector<8x32xf32>
    %89 = vector.broadcast %68 : vector<1x32xf32> to vector<8x32xf32>
    %90 = arith.addf %88, %89 : vector<8x32xf32>
    %c128 = arith.constant 128 : index
    %c0_36 = arith.constant 0 : index
    %91 = vector.load %arg1[%c128, %c0_36] : memref<272x128xf32, #tpu.memory_space<vmem>>, vector<32x64xf32>
    %cst_37 = arith.constant dense<0.000000e+00> : vector<8x64xf32>
    %92 = tpu.matmul %90, %91, %cst_37 {dimension_numbers = #tpu.dot_dimension_numbers<[1], [0], [0], [1], [0, 0, 1, 1], [], []>} : vector<8x32xf32>, vector<32x64xf32>, vector<8x64xf32> -> vector<8x64xf32>
    %c261 = arith.constant 261 : index
    %c0_38 = arith.constant 0 : index
    %93 = vector.load %arg1[%c261, %c0_38] : memref<272x128xf32, #tpu.memory_space<vmem>>, vector<1x64xf32>
    %94 = vector.broadcast %93 : vector<1x64xf32> to vector<8x64xf32>
    %95 = arith.addf %92, %94 : vector<8x64xf32>
    %cst_39 = arith.constant 0.000000e+00 : f32
    %96 = vector.broadcast %cst_39 : f32 to vector<8x64xf32>
    %97 = arith.maximumf %95, %96 : vector<8x64xf32>
    %c160 = arith.constant 160 : index
    %c0_40 = arith.constant 0 : index
    %98 = vector.load %arg1[%c160, %c0_40] : memref<272x128xf32, #tpu.memory_space<vmem>>, vector<64x32xf32>
    %cst_41 = arith.constant dense<0.000000e+00> : vector<8x32xf32>
    %99 = tpu.matmul %97, %98, %cst_41 {dimension_numbers = #tpu.dot_dimension_numbers<[1], [0], [0], [1], [0, 0, 1, 1], [], []>} : vector<8x64xf32>, vector<64x32xf32>, vector<8x32xf32> -> vector<8x32xf32>
    %c262 = arith.constant 262 : index
    %c0_42 = arith.constant 0 : index
    %100 = vector.load %arg1[%c262, %c0_42] : memref<272x128xf32, #tpu.memory_space<vmem>>, vector<1x32xf32>
    %101 = vector.broadcast %100 : vector<1x32xf32> to vector<8x32xf32>
    %102 = arith.addf %99, %101 : vector<8x32xf32>
    %103 = arith.addf %90, %102 : vector<8x32xf32>
    %c263 = arith.constant 263 : index
    %c0_43 = arith.constant 0 : index
    %104 = vector.load %arg1[%c263, %c0_43] : memref<272x128xf32, #tpu.memory_space<vmem>>, vector<1x32xf32>
    %c264 = arith.constant 264 : index
    %c0_44 = arith.constant 0 : index
    %105 = vector.load %arg1[%c264, %c0_44] : memref<272x128xf32, #tpu.memory_space<vmem>>, vector<1x32xf32>
    %cst_45 = arith.constant dense<0.000000e+00> : vector<8xf32>
    %106 = vector.multi_reduction <add>, %103, %cst_45 [1] : vector<8x32xf32> to vector<8xf32>
    %107 = vector.shape_cast %106 : vector<8xf32> to vector<8x1xf32>
    %cst_46 = arith.constant 3.200000e+01 : f32
    %108 = vector.broadcast %cst_46 : f32 to vector<8x1xf32>
    %109 = arith.divf %107, %108 : vector<8x1xf32>
    %110 = vector.broadcast %109 : vector<8x1xf32> to vector<8x32xf32>
    %111 = arith.subf %103, %110 : vector<8x32xf32>
    %112 = arith.mulf %111, %111 : vector<8x32xf32>
    %cst_47 = arith.constant dense<0.000000e+00> : vector<8xf32>
    %113 = vector.multi_reduction <add>, %112, %cst_47 [1] : vector<8x32xf32> to vector<8xf32>
    %114 = vector.shape_cast %113 : vector<8xf32> to vector<8x1xf32>
    %cst_48 = arith.constant 3.200000e+01 : f32
    %115 = vector.broadcast %cst_48 : f32 to vector<8x1xf32>
    %116 = arith.divf %114, %115 : vector<8x1xf32>
    %117 = vector.broadcast %109 : vector<8x1xf32> to vector<8x32xf32>
    %118 = arith.subf %103, %117 : vector<8x32xf32>
    %cst_49 = arith.constant 9.99999974E-6 : f32
    %119 = vector.broadcast %cst_49 : f32 to vector<8x1xf32>
    %120 = arith.addf %116, %119 : vector<8x1xf32>
    %121 = math.rsqrt %120 : vector<8x1xf32>
    %122 = vector.broadcast %121 : vector<8x1xf32> to vector<8x32xf32>
    %123 = arith.mulf %118, %122 : vector<8x32xf32>
    %124 = vector.broadcast %104 : vector<1x32xf32> to vector<8x32xf32>
    %125 = arith.mulf %123, %124 : vector<8x32xf32>
    %126 = vector.broadcast %105 : vector<1x32xf32> to vector<8x32xf32>
    %127 = arith.addf %125, %126 : vector<8x32xf32>
    %c8 = arith.constant 8 : index
    %c0_50 = arith.constant 0 : index
    %128 = vector.load %arg2[%c8, %c0_50] : memref<16x128xf32, #tpu.memory_space<vmem>>, vector<8x8xf32>
    %cst_51 = arith.constant dense<0.000000e+00> : vector<8x32xf32>
    %129 = tpu.matmul %128, %127, %cst_51 {dimension_numbers = #tpu.dot_dimension_numbers<[1], [0], [0], [1], [0, 0, 1, 1], [], []>} : vector<8x8xf32>, vector<8x32xf32>, vector<8x32xf32> -> vector<8x32xf32>
    %c224 = arith.constant 224 : index
    %c0_52 = arith.constant 0 : index
    %130 = vector.load %arg1[%c224, %c0_52] : memref<272x128xf32, #tpu.memory_space<vmem>>, vector<32x128xf32>
    %cst_53 = arith.constant dense<0.000000e+00> : vector<8x128xf32>
    %131 = tpu.matmul %129, %130, %cst_53 {dimension_numbers = #tpu.dot_dimension_numbers<[1], [0], [0], [1], [0, 0, 1, 1], [], []>} : vector<8x32xf32>, vector<32x128xf32>, vector<8x128xf32> -> vector<8x128xf32>
    %c265 = arith.constant 265 : index
    %c0_54 = arith.constant 0 : index
    %132 = vector.load %arg1[%c265, %c0_54] : memref<272x128xf32, #tpu.memory_space<vmem>>, vector<1x128xf32>
    %133 = vector.broadcast %132 : vector<1x128xf32> to vector<8x128xf32>
    %134 = arith.addf %131, %133 : vector<8x128xf32>
    %c0_55 = arith.constant 0 : index
    %c0_56 = arith.constant 0 : index
    %135 = vector.load %arg3[%c0_55, %c0_56] : memref<8x128xf32, #tpu.memory_space<vmem>>, vector<8x128xf32>
    tpu.vector_store %arg3[%c0_55, %c0_56], %134 {strides = array<i32>} : memref<8x128xf32, #tpu.memory_space<vmem>>, vector<8x128xf32>,
    return
  }
}

</mosaic_0001>

<llo_original>
// kernel: tpu_custom_call.1
$region0: #{tpu_custom_call.1}
  #allocation0 [shape = 'u32[]', space=smem, size = 0x4, offset = 0x4, fixed_abs, tag = 'smem constant byte address 0x4 - core index']
  #allocation1 [shape = 'u32[72,128]{1,0:T(1,128)}', space=vmem, size = 0x9000, scoped, tag = 'internal scratch']
  %s0 = inlined_call_operand.hbm [shape: f32[5,2048], index: 0, kind: input, shape index: {}]
  %s1 = inlined_call_operand.hbm [shape: f32[272,128], index: 1, kind: input, shape index: {}]
  %s2 = inlined_call_operand.hbm [shape: f32[16,128], index: 2, kind: input, shape index: {}]
  %s3 = inlined_call_operand.hbm [shape: f32[8,128], index: 3, kind: output, shape index: {}]
  %s4 = sld [smem:[#allocation0]]
  $region34: #{tpu_custom_call.1} parent=0
    _
  %s6 = ssub.s32 1, %s4
  %s7 = scalar_select 0, %s6, %s4
  $region1: #{tpu_custom_call.1} parent=0
    #allocation2 [shape = 'u8[65536]{0}', space=vmem, size = 0x10000, scoped, tag = 'input window, operand 0, single buffered']
    #allocation3 [shape = 's32[1]{0}', space=sflag, size = 0x4, scoped, tag = 'scoped memory for tpu_custom_call.1']
    #allocation4 [shape = 's32[1]{0}', space=sflag, size = 0x4, scoped, tag = 'scoped memory for tpu_custom_call.1']
    #allocation5 [shape = 'u8[139264]{0}', space=vmem, size = 0x22000, scoped, tag = 'input window, operand 1, single buffered']
    #allocation6 [shape = 's32[1]{0}', space=sflag, size = 0x4, scoped, tag = 'scoped memory for tpu_custom_call.1']
    #allocation7 [shape = 'u8[8192]{0}', space=vmem, size = 0x2000, scoped, tag = 'input window, operand 2, single buffered']
    #allocation8 [shape = 'u8[4096]{0}', space=vmem, size = 0x1000, scoped, tag = 'output window, operand 0, single buffered']
    %8 = vsyncpa [#allocation3], 0
    %9 = vsyncpa [#allocation6], 0
    %10 = vsyncpa [#allocation4], 0
    // Predicated region
    $region2: #{tpu_custom_call.1} parent=1 // pred_check
      _
    $region3: #{tpu_custom_call.1} parent=1 // pred_check_branch
      %12 = sbr.rel (0) target = $region5
    $region4: #{tpu_custom_call.1} parent=1 // pred_region
      %14 = vsyncadd [#allocation3], 0
      %s16 = sshll.u32 %s0, 4
      %s17 = int_to_ptr.hbm [resolvable:$true] %s16
      %s18 = sshll.u32 [#allocation2], 4
      %s19 = int_to_ptr.vmem [resolvable:$true] %s18
      %21 = dma.hbm_to_vmem [thread:$0]  %s17, 2048, %s19, [#allocation3]
    $region5: #{tpu_custom_call.1} parent=1 // pred_fallthru
      _
    // Predicated region
    $region6: #{tpu_custom_call.1} parent=1 // pred_check
      _
    $region7: #{tpu_custom_call.1} parent=1 // pred_check_branch
      %23 = sbr.rel (0) target = $region9
    $region8: #{tpu_custom_call.1} parent=1 // pred_region
      %25 = vsyncadd [#allocation6], 0
      %s26 = sshll.u32 %s1, 4
      %s27 = int_to_ptr.hbm [resolvable:$true] %s26
      %s28 = sshll.u32 [#allocation5], 4
      %s29 = int_to_ptr.vmem [resolvable:$true] %s28
      %34 = dma.hbm_to_vmem [thread:$0]  %s27, 4352, %s29, [#allocation6], 128, 128, 8
    $region9: #{tpu_custom_call.1} parent=1 // pred_fallthru
      _
    // Predicated region
    $region10: #{tpu_custom_call.1} parent=1 // pred_check
      _
    $region11: #{tpu_custom_call.1} parent=1 // pred_check_branch
      %36 = sbr.rel (0) target = $region13
    $region12: #{tpu_custom_call.1} parent=1 // pred_region
      %38 = vsyncadd [#allocation6], 0
      %s39 = sshll.u32 %s2, 4
      %s40 = int_to_ptr.hbm [resolvable:$true] %s39
      %s41 = sshll.u32 [#allocation7], 4
      %s42 = int_to_ptr.vmem [resolvable:$true] %s41
      %47 = dma.hbm_to_vmem [thread:$0]  %s40, 256, %s42, [#allocation6], 128, 128, 8
    $region13: #{tpu_custom_call.1} parent=1 // pred_fallthru
      _
    // Predicated region
    $region14: #{tpu_custom_call.1} parent=1 // pred_check
      _
    $region15: #{tpu_custom_call.1} parent=1 // pred_check_branch
      %49 = sbr.rel (0) target = $region17
    $region16: #{tpu_custom_call.1} parent=1 // pred_region
      %51 = dma.done [#allocation3], 2048
    $region17: #{tpu_custom_call.1} parent=1 // pred_fallthru
      _
    // Predicated region
    $region18: #{tpu_custom_call.1} parent=1 // pred_check
      _
    $region19: #{tpu_custom_call.1} parent=1 // pred_check_branch
      %53 = sbr.rel (0) target = $region21
    $region20: #{tpu_custom_call.1} parent=1 // pred_region
      %55 = dma.done [#allocation6], 4352
    $region21: #{tpu_custom_call.1} parent=1 // pred_fallthru
      _
    // Predicated region
    $region22: #{tpu_custom_call.1} parent=1 // pred_check
      _
    $region23: #{tpu_custom_call.1} parent=1 // pred_check_branch
      %57 = sbr.rel (0) target = $region25
    $region24: #{tpu_custom_call.1} parent=1 // pred_region
      %59 = dma.done [#allocation6], 256
    $region25: #{tpu_custom_call.1} parent=1 // pred_fallthru
      _
    %v60 = vld [vmem:[#allocation5] sm:$0xff]
    %v61 = vld [vmem:[#allocation5 + $0x8] sm:$0xff]
    %v62 = vld [vmem:[#allocation5 + $0x10] sm:$0xff]
    %v63 = vld [vmem:[#allocation5 + $0x18] sm:$0xff]
    %v64 = vld [vmem:[#allocation2] sm:$0x1f]
    %v65 = vld [vmem:[#allocation2 + $0x8] sm:$0x1f]
    %v66 = vld [vmem:[#allocation2 + $0x10] sm:$0x1f]
    %v67 = vld [vmem:[#allocation2 + $0x18] sm:$0x1f]
    %v68 = vld [vmem:[#allocation2 + $0x20] sm:$0x1f]
    %v69 = vld [vmem:[#allocation2 + $0x28] sm:$0x1f]
    %v70 = vld [vmem:[#allocation2 + $0x30] sm:$0x1f]
    %v71 = vld [vmem:[#allocation2 + $0x38] sm:$0x1f]
    %v72 = vld [vmem:[#allocation2 + $0x40] sm:$0x1f]
    %v73 = vld [vmem:[#allocation2 + $0x48] sm:$0x1f]
    %v74 = vld [vmem:[#allocation2 + $0x50] sm:$0x1f]
    %v75 = vld [vmem:[#allocation2 + $0x58] sm:$0x1f]
    %v76 = vld [vmem:[#allocation2 + $0x60] sm:$0x1f]
    %v77 = vld [vmem:[#allocation2 + $0x68] sm:$0x1f]
    %v78 = vld [vmem:[#allocation2 + $0x70] sm:$0x1f]
    %v79 = vld [vmem:[#allocation2 + $0x78] sm:$0x1f]
    %vm80 = vcmask 39936
    %v82 = vsel %vm80, %v60, 0
    %v85 = vsel %vm80, %v61, 0
    %v88 = vsel %vm80, %v62, 0
    %v91 = vsel %vm80, %v63, 0
    %vm93 = vcmask 1044480
    %v95 = vsel %vm93, %v64, 0
    %v98 = vsel %vm93, %v65, 0
    %v101 = vsel %vm93, %v66, 0
    %v104 = vsel %vm93, %v67, 0
    %v107 = vsel %vm93, %v68, 0
    %v110 = vsel %vm93, %v69, 0
    %v113 = vsel %vm93, %v70, 0
    %v116 = vsel %vm93, %v71, 0
    %v119 = vsel %vm93, %v72, 0
    %v122 = vsel %vm93, %v73, 0
    %v125 = vsel %vm93, %v74, 0
    %v128 = vsel %vm93, %v75, 0
    %v131 = vsel %vm93, %v76, 0
    %v134 = vsel %vm93, %v77, 0
    %v137 = vsel %vm93, %v78, 0
    %v140 = vsel %vm93, %v79, 0
    %142 = vmatpush.msra.mxu0 0.0
    %143 = vmatpush.msra.mxu0 0.0
    %144 = vmatpush.msra.mxu0 0.0
    %145 = vmatpush.msra.mxu0 0.0
    %146 = vmatpush.msra.mxu0 0.0
    %147 = vmatpush.msra.mxu0 0.0
    %148 = vmatpush.msra.mxu0 0.0
    %149 = vmatpush.msra.mxu0 0.0
    %150 = vmatpush.msra.mxu0 0.0
    %151 = vmatpush.msra.mxu0 0.0
    %152 = vmatpush.msra.mxu0 0.0
    %153 = vmatpush.msra.mxu0 0.0
    %154 = vmatpush.msra.mxu0 0.0
    %155 = vmatpush.msra.mxu0 0.0
    %156 = vmatpush.msra.mxu0 0.0
    %157 = vmatpush.msra.mxu0 %v95
    %158 = vmatmul.f32.gmra.mxu0 %v82
    %v159 = vpop.f32.mrf.mxu0
    %v160 = vadd.f32 0.0, %v159
    %161 = vmatmul.f32.gmra.mxu0 %v85
    %v162 = vpop.f32.mrf.mxu0
    %v163 = vadd.f32 0.0, %v162
    %164 = vmatmul.f32.gmra.mxu0 %v88
    %v165 = vpop.f32.mrf.mxu0
    %v166 = vadd.f32 0.0, %v165
    %167 = vmatmul.f32.gmra.mxu0 %v91
    %v168 = vpop.f32.mrf.mxu0
    %v169 = vadd.f32 0.0, %v168
    %170 = vdwg.mxu0
    %171 = vmatpush.msra.mxu0 0.0
    %172 = vmatpush.msra.mxu0 0.0
    %173 = vmatpush.msra.mxu0 0.0
    %174 = vmatpush.msra.mxu0 0.0
    %175 = vmatpush.msra.mxu0 0.0
    %176 = vmatpush.msra.mxu0 0.0
    %177 = vmatpush.msra.mxu0 0.0
    %178 = vmatpush.msra.mxu0 0.0
    %179 = vmatpush.msra.mxu0 0.0
    %180 = vmatpush.msra.mxu0 0.0
    %181 = vmatpush.msra.mxu0 0.0
    %182 = vmatpush.msra.mxu0 0.0
    %183 = vmatpush.msra.mxu0 0.0
    %184 = vmatpush.msra.mxu0 0.0
    %185 = vmatpush.msra.mxu0 0.0
    %186 = vmatpush.msra.mxu0 %v98
    %187 = vmatmul.f32.gmra.mxu0 %v82
    %v188 = vpop.f32.mrf.mxu0
    %v189 = vadd.f32 0.0, %v188
    %190 = vmatmul.f32.gmra.mxu0 %v85
    %v191 = vpop.f32.mrf.mxu0
    %v192 = vadd.f32 0.0, %v191
    %193 = vmatmul.f32.gmra.mxu0 %v88
    %v194 = vpop.f32.mrf.mxu0
    %v195 = vadd.f32 0.0, %v194
    %196 = vmatmul.f32.gmra.mxu0 %v91
    %v197 = vpop.f32.mrf.mxu0
    %v198 = vadd.f32 0.0, %v197
    %199 = vdwg.mxu0
    %200 = vmatpush.msra.mxu0 0.0
    %201 = vmatpush.msra.mxu0 0.0
    %202 = vmatpush.msra.mxu0 0.0
    %203 = vmatpush.msra.mxu0 0.0
    %204 = vmatpush.msra.mxu0 0.0
    %205 = vmatpush.msra.mxu0 0.0
    %206 = vmatpush.msra.mxu0 0.0
    %207 = vmatpush.msra.mxu0 0.0
    %208 = vmatpush.msra.mxu0 0.0
    %209 = vmatpush.msra.mxu0 0.0
    %210 = vmatpush.msra.mxu0 0.0
    %211 = vmatpush.msra.mxu0 0.0
    %212 = vmatpush.msra.mxu0 0.0
    %213 = vmatpush.msra.mxu0 0.0
    %214 = vmatpush.msra.mxu0 0.0
    %215 = vmatpush.msra.mxu0 %v101
    %216 = vmatmul.f32.gmra.mxu0 %v82
    %v217 = vpop.f32.mrf.mxu0
    %v218 = vadd.f32 0.0, %v217
    %219 = vmatmul.f32.gmra.mxu0 %v85
    %v220 = vpop.f32.mrf.mxu0
    %v221 = vadd.f32 0.0, %v220
    %222 = vmatmul.f32.gmra.mxu0 %v88
    %v223 = vpop.f32.mrf.mxu0
    %v224 = vadd.f32 0.0, %v223
    %225 = vmatmul.f32.gmra.mxu0 %v91
    %v226 = vpop.f32.mrf.mxu0
    %v227 = vadd.f32 0.0, %v226
    %228 = vdwg.mxu0
    %229 = vmatpush.msra.mxu0 0.0
    %230 = vmatpush.msra.mxu0 0.0
    %231 = vmatpush.msra.mxu0 0.0
    %232 = vmatpush.msra.mxu0 0.0
    %233 = vmatpush.msra.mxu0 0.0
    %234 = vmatpush.msra.mxu0 0.0
    %235 = vmatpush.msra.mxu0 0.0
    %236 = vmatpush.msra.mxu0 0.0
    %237 = vmatpush.msra.mxu0 0.0
    %238 = vmatpush.msra.mxu0 0.0
    %239 = vmatpush.msra.mxu0 0.0
    %240 = vmatpush.msra.mxu0 0.0
    %241 = vmatpush.msra.mxu0 0.0
    %242 = vmatpush.msra.mxu0 0.0
    %243 = vmatpush.msra.mxu0 0.0
    %244 = vmatpush.msra.mxu0 %v104
    %245 = vmatmul.f32.gmra.mxu0 %v82
    %v246 = vpop.f32.mrf.mxu0
    %v247 = vadd.f32 0.0, %v246
    %248 = vmatmul.f32.gmra.mxu0 %v85
    %v249 = vpop.f32.mrf.mxu0
    %v250 = vadd.f32 0.0, %v249
    %251 = vmatmul.f32.gmra.mxu0 %v88
    %v252 = vpop.f32.mrf.mxu0
    %v253 = vadd.f32 0.0, %v252
    %254 = vmatmul.f32.gmra.mxu0 %v91
    %v255 = vpop.f32.mrf.mxu0
    %v256 = vadd.f32 0.0, %v255
    %257 = vdwg.mxu0
    %258 = vmatpush.msra.mxu0 0.0
    %259 = vmatpush.msra.mxu0 0.0
    %260 = vmatpush.msra.mxu0 0.0
    %261 = vmatpush.msra.mxu0 0.0
    %262 = vmatpush.msra.mxu0 0.0
    %263 = vmatpush.msra.mxu0 0.0
    %264 = vmatpush.msra.mxu0 0.0
    %265 = vmatpush.msra.mxu0 0.0
    %266 = vmatpush.msra.mxu0 0.0
    %267 = vmatpush.msra.mxu0 0.0
    %268 = vmatpush.msra.mxu0 0.0
    %269 = vmatpush.msra.mxu0 0.0
    %270 = vmatpush.msra.mxu0 0.0
    %271 = vmatpush.msra.mxu0 0.0
    %272 = vmatpush.msra.mxu0 0.0
    %273 = vmatpush.msra.mxu0 %v107
    %274 = vmatmul.f32.gmra.mxu0 %v82
    %v275 = vpop.f32.mrf.mxu0
    %v276 = vadd.f32 0.0, %v275
    %277 = vmatmul.f32.gmra.mxu0 %v85
    %v278 = vpop.f32.mrf.mxu0
    %v279 = vadd.f32 0.0, %v278
    %280 = vmatmul.f32.gmra.mxu0 %v88
    %v281 = vpop.f32.mrf.mxu0
    %v282 = vadd.f32 0.0, %v281
    %283 = vmatmul.f32.gmra.mxu0 %v91
    %v284 = vpop.f32.mrf.mxu0
    %v285 = vadd.f32 0.0, %v284
    %286 = vdwg.mxu0
    %287 = vmatpush.msra.mxu0 0.0
    %288 = vmatpush.msra.mxu0 0.0
    %289 = vmatpush.msra.mxu0 0.0
    %290 = vmatpush.msra.mxu0 0.0
    %291 = vmatpush.msra.mxu0 0.0
    %292 = vmatpush.msra.mxu0 0.0
    %293 = vmatpush.msra.mxu0 0.0
    %294 = vmatpush.msra.mxu0 0.0
    %295 = vmatpush.msra.mxu0 0.0
    %296 = vmatpush.msra.mxu0 0.0
    %297 = vmatpush.msra.mxu0 0.0
    %298 = vmatpush.msra.mxu0 0.0
    %299 = vmatpush.msra.mxu0 0.0
    %300 = vmatpush.msra.mxu0 0.0
    %301 = vmatpush.msra.mxu0 0.0
    %302 = vmatpush.msra.mxu0 %v110
    %303 = vmatmul.f32.gmra.mxu0 %v82
    %v304 = vpop.f32.mrf.mxu0
    %v305 = vadd.f32 0.0, %v304
    %306 = vmatmul.f32.gmra.mxu0 %v85
    %v307 = vpop.f32.mrf.mxu0
    %v308 = vadd.f32 0.0, %v307
    %309 = vmatmul.f32.gmra.mxu0 %v88
    %v310 = vpop.f32.mrf.mxu0
    %v311 = vadd.f32 0.0, %v310
    %312 = vmatmul.f32.gmra.mxu0 %v91
    %v313 = vpop.f32.mrf.mxu0
    %v314 = vadd.f32 0.0, %v313
    %315 = vdwg.mxu0
    %316 = vmatpush.msra.mxu0 0.0
    %317 = vmatpush.msra.mxu0 0.0
    %318 = vmatpush.msra.mxu0 0.0
    %319 = vmatpush.msra.mxu0 0.0
    %320 = vmatpush.msra.mxu0 0.0
    %321 = vmatpush.msra.mxu0 0.0
    %322 = vmatpush.msra.mxu0 0.0
    %323 = vmatpush.msra.mxu0 0.0
    %324 = vmatpush.msra.mxu0 0.0
    %325 = vmatpush.msra.mxu0 0.0
    %326 = vmatpush.msra.mxu0 0.0
    %327 = vmatpush.msra.mxu0 0.0
    %328 = vmatpush.msra.mxu0 0.0
    %329 = vmatpush.msra.mxu0 0.0
    %330 = vmatpush.msra.mxu0 0.0
    %331 = vmatpush.msra.mxu0 %v113
    %332 = vmatmul.f32.gmra.mxu0 %v82
    %v333 = vpop.f32.mrf.mxu0
    %v334 = vadd.f32 0.0, %v333
    %335 = vmatmul.f32.gmra.mxu0 %v85
    %v336 = vpop.f32.mrf.mxu0
    %v337 = vadd.f32 0.0, %v336
    %338 = vmatmul.f32.gmra.mxu0 %v88
    %v339 = vpop.f32.mrf.mxu0
    %v340 = vadd.f32 0.0, %v339
    %341 = vmatmul.f32.gmra.mxu0 %v91
    %v342 = vpop.f32.mrf.mxu0
    %v343 = vadd.f32 0.0, %v342
    %344 = vdwg.mxu0
    %345 = vmatpush.msra.mxu0 0.0
    %346 = vmatpush.msra.mxu0 0.0
    %347 = vmatpush.msra.mxu0 0.0
    %348 = vmatpush.msra.mxu0 0.0
    %349 = vmatpush.msra.mxu0 0.0
    %350 = vmatpush.msra.mxu0 0.0
    %351 = vmatpush.msra.mxu0 0.0
    %352 = vmatpush.msra.mxu0 0.0
    %353 = vmatpush.msra.mxu0 0.0
    %354 = vmatpush.msra.mxu0 0.0
    %355 = vmatpush.msra.mxu0 0.0
    %356 = vmatpush.msra.mxu0 0.0
    %357 = vmatpush.msra.mxu0 0.0
    %358 = vmatpush.msra.mxu0 0.0
    %359 = vmatpush.msra.mxu0 0.0
    %360 = vmatpush.msra.mxu0 %v116
    %361 = vmatmul.f32.gmra.mxu0 %v82
    %v362 = vpop.f32.mrf.mxu0
    %v363 = vadd.f32 0.0, %v362
    %364 = vmatmul.f32.gmra.mxu0 %v85
    %v365 = vpop.f32.mrf.mxu0
    %v366 = vadd.f32 0.0, %v365
    %367 = vmatmul.f32.gmra.mxu0 %v88
    %v368 = vpop.f32.mrf.mxu0
    %v369 = vadd.f32 0.0, %v368
    %370 = vmatmul.f32.gmra.mxu0 %v91
    %v371 = vpop.f32.mrf.mxu0
    %v372 = vadd.f32 0.0, %v371
    %373 = vdwg.mxu0
    %374 = vmatpush.msra.mxu0 0.0
    %375 = vmatpush.msra.mxu0 0.0
    %376 = vmatpush.msra.mxu0 0.0
    %377 = vmatpush.msra.mxu0 0.0
    %378 = vmatpush.msra.mxu0 0.0
    %379 = vmatpush.msra.mxu0 0.0
    %380 = vmatpush.msra.mxu0 0.0
    %381 = vmatpush.msra.mxu0 0.0
    %382 = vmatpush.msra.mxu0 0.0
    %383 = vmatpush.msra.mxu0 0.0
    %384 = vmatpush.msra.mxu0 0.0
    %385 = vmatpush.msra.mxu0 0.0
    %386 = vmatpush.msra.mxu0 0.0
    %387 = vmatpush.msra.mxu0 0.0
    %388 = vmatpush.msra.mxu0 0.0
    %389 = vmatpush.msra.mxu0 %v119
    %390 = vmatmul.f32.gmra.mxu0 %v82
    %v391 = vpop.f32.mrf.mxu0
    %v392 = vadd.f32 0.0, %v391
    %393 = vmatmul.f32.gmra.mxu0 %v85
    %v394 = vpop.f32.mrf.mxu0
    %v395 = vadd.f32 0.0, %v394
    %396 = vmatmul.f32.gmra.mxu0 %v88
    %v397 = vpop.f32.mrf.mxu0
    %v398 = vadd.f32 0.0, %v397
    %399 = vmatmul.f32.gmra.mxu0 %v91
    %v400 = vpop.f32.mrf.mxu0
    %v401 = vadd.f32 0.0, %v400
    %402 = vdwg.mxu0
    %403 = vmatpush.msra.mxu0 0.0
    %404 = vmatpush.msra.mxu0 0.0
    %405 = vmatpush.msra.mxu0 0.0
    %406 = vmatpush.msra.mxu0 0.0
    %407 = vmatpush.msra.mxu0 0.0
    %408 = vmatpush.msra.mxu0 0.0
    %409 = vmatpush.msra.mxu0 0.0
    %410 = vmatpush.msra.mxu0 0.0
    %411 = vmatpush.msra.mxu0 0.0
    %412 = vmatpush.msra.mxu0 0.0
    %413 = vmatpush.msra.mxu0 0.0
    %414 = vmatpush.msra.mxu0 0.0
    %415 = vmatpush.msra.mxu0 0.0
    %416 = vmatpush.msra.mxu0 0.0
    %417 = vmatpush.msra.mxu0 0.0
    %418 = vmatpush.msra.mxu0 %v122
    %419 = vmatmul.f32.gmra.mxu0 %v82
    %v420 = vpop.f32.mrf.mxu0
    %v421 = vadd.f32 0.0, %v420
    %422 = vmatmul.f32.gmra.mxu0 %v85
    %v423 = vpop.f32.mrf.mxu0
    %v424 = vadd.f32 0.0, %v423
    %425 = vmatmul.f32.gmra.mxu0 %v88
    %v426 = vpop.f32.mrf.mxu0
    %v427 = vadd.f32 0.0, %v426
    %428 = vmatmul.f32.gmra.mxu0 %v91
    %v429 = vpop.f32.mrf.mxu0
    %v430 = vadd.f32 0.0, %v429
    %431 = vdwg.mxu0
    %432 = vmatpush.msra.mxu0 0.0
    %433 = vmatpush.msra.mxu0 0.0
    %434 = vmatpush.msra.mxu0 0.0
    %435 = vmatpush.msra.mxu0 0.0
    %436 = vmatpush.msra.mxu0 0.0
    %437 = vmatpush.msra.mxu0 0.0
    %438 = vmatpush.msra.mxu0 0.0
    %439 = vmatpush.msra.mxu0 0.0
    %440 = vmatpush.msra.mxu0 0.0
    %441 = vmatpush.msra.mxu0 0.0
    %442 = vmatpush.msra.mxu0 0.0
    %443 = vmatpush.msra.mxu0 0.0
    %444 = vmatpush.msra.mxu0 0.0
    %445 = vmatpush.msra.mxu0 0.0
    %446 = vmatpush.msra.mxu0 0.0
    %447 = vmatpush.msra.mxu0 %v125
    %448 = vmatmul.f32.gmra.mxu0 %v82
    %v449 = vpop.f32.mrf.mxu0
    %v450 = vadd.f32 0.0, %v449
    %451 = vmatmul.f32.gmra.mxu0 %v85
    %v452 = vpop.f32.mrf.mxu0
    %v453 = vadd.f32 0.0, %v452
    %454 = vmatmul.f32.gmra.mxu0 %v88
    %v455 = vpop.f32.mrf.mxu0
    %v456 = vadd.f32 0.0, %v455
    %457 = vmatmul.f32.gmra.mxu0 %v91
    %v458 = vpop.f32.mrf.mxu0
    %v459 = vadd.f32 0.0, %v458
    %460 = vdwg.mxu0
    %461 = vmatpush.msra.mxu0 0.0
    %462 = vmatpush.msra.mxu0 0.0
    %463 = vmatpush.msra.mxu0 0.0
    %464 = vmatpush.msra.mxu0 0.0
    %465 = vmatpush.msra.mxu0 0.0
    %466 = vmatpush.msra.mxu0 0.0
    %467 = vmatpush.msra.mxu0 0.0
    %468 = vmatpush.msra.mxu0 0.0
    %469 = vmatpush.msra.mxu0 0.0
    %470 = vmatpush.msra.mxu0 0.0
    %471 = vmatpush.msra.mxu0 0.0
    %472 = vmatpush.msra.mxu0 0.0
    %473 = vmatpush.msra.mxu0 0.0
    %474 = vmatpush.msra.mxu0 0.0
    %475 = vmatpush.msra.mxu0 0.0
    %476 = vmatpush.msra.mxu0 %v128
    %477 = vmatmul.f32.gmra.mxu0 %v82
    %v478 = vpop.f32.mrf.mxu0
    %v479 = vadd.f32 0.0, %v478
    %480 = vmatmul.f32.gmra.mxu0 %v85
    %v481 = vpop.f32.mrf.mxu0
    %v482 = vadd.f32 0.0, %v481
    %483 = vmatmul.f32.gmra.mxu0 %v88
    %v484 = vpop.f32.mrf.mxu0
    %v485 = vadd.f32 0.0, %v484
    %486 = vmatmul.f32.gmra.mxu0 %v91
    %v487 = vpop.f32.mrf.mxu0
    %v488 = vadd.f32 0.0, %v487
    %489 = vdwg.mxu0
    %490 = vmatpush.msra.mxu0 0.0
    %491 = vmatpush.msra.mxu0 0.0
    %492 = vmatpush.msra.mxu0 0.0
    %493 = vmatpush.msra.mxu0 0.0
    %494 = vmatpush.msra.mxu0 0.0
    %495 = vmatpush.msra.mxu0 0.0
    %496 = vmatpush.msra.mxu0 0.0
    %497 = vmatpush.msra.mxu0 0.0
    %498 = vmatpush.msra.mxu0 0.0
    %499 = vmatpush.msra.mxu0 0.0
    %500 = vmatpush.msra.mxu0 0.0
    %501 = vmatpush.msra.mxu0 0.0
    %502 = vmatpush.msra.mxu0 0.0
    %503 = vmatpush.msra.mxu0 0.0
    %504 = vmatpush.msra.mxu0 0.0
    %505 = vmatpush.msra.mxu0 %v131
    %506 = vmatmul.f32.gmra.mxu0 %v82
    %v507 = vpop.f32.mrf.mxu0
    %v508 = vadd.f32 0.0, %v507
    %509 = vmatmul.f32.gmra.mxu0 %v85
    %v510 = vpop.f32.mrf.mxu0
    %v511 = vadd.f32 0.0, %v510
    %512 = vmatmul.f32.gmra.mxu0 %v88
    %v513 = vpop.f32.mrf.mxu0
    %v514 = vadd.f32 0.0, %v513
    %515 = vmatmul.f32.gmra.mxu0 %v91
    %v516 = vpop.f32.mrf.mxu0
    %v517 = vadd.f32 0.0, %v516
    %518 = vdwg.mxu0
    %519 = vmatpush.msra.mxu0 0.0
    %520 = vmatpush.msra.mxu0 0.0
    %521 = vmatpush.msra.mxu0 0.0
    %522 = vmatpush.msra.mxu0 0.0
    %523 = vmatpush.msra.mxu0 0.0
    %524 = vmatpush.msra.mxu0 0.0
    %525 = vmatpush.msra.mxu0 0.0
    %526 = vmatpush.msra.mxu0 0.0
    %527 = vmatpush.msra.mxu0 0.0
    %528 = vmatpush.msra.mxu0 0.0
    %529 = vmatpush.msra.mxu0 0.0
    %530 = vmatpush.msra.mxu0 0.0
    %531 = vmatpush.msra.mxu0 0.0
    %532 = vmatpush.msra.mxu0 0.0
    %533 = vmatpush.msra.mxu0 0.0
    %534 = vmatpush.msra.mxu0 %v134
    %535 = vmatmul.f32.gmra.mxu0 %v82
    %v536 = vpop.f32.mrf.mxu0
    %v537 = vadd.f32 0.0, %v536
    %538 = vmatmul.f32.gmra.mxu0 %v85
    %v539 = vpop.f32.mrf.mxu0
    %v540 = vadd.f32 0.0, %v539
    %541 = vmatmul.f32.gmra.mxu0 %v88
    %v542 = vpop.f32.mrf.mxu0
    %v543 = vadd.f32 0.0, %v542
    %544 = vmatmul.f32.gmra.mxu0 %v91
    %v545 = vpop.f32.mrf.mxu0
    %v546 = vadd.f32 0.0, %v545
    %547 = vdwg.mxu0
    %548 = vmatpush.msra.mxu0 0.0
    %549 = vmatpush.msra.mxu0 0.0
    %550 = vmatpush.msra.mxu0 0.0
    %551 = vmatpush.msra.mxu0 0.0
    %552 = vmatpush.msra.mxu0 0.0
    %553 = vmatpush.msra.mxu0 0.0
    %554 = vmatpush.msra.mxu0 0.0
    %555 = vmatpush.msra.mxu0 0.0
    %556 = vmatpush.msra.mxu0 0.0
    %557 = vmatpush.msra.mxu0 0.0
    %558 = vmatpush.msra.mxu0 0.0
    %559 = vmatpush.msra.mxu0 0.0
    %560 = vmatpush.msra.mxu0 0.0
    %561 = vmatpush.msra.mxu0 0.0
    %562 = vmatpush.msra.mxu0 0.0
    %563 = vmatpush.msra.mxu0 %v137
    %564 = vmatmul.f32.gmra.mxu0 %v82
    %v565 = vpop.f32.mrf.mxu0
    %v566 = vadd.f32 0.0, %v565
    %567 = vmatmul.f32.gmra.mxu0 %v85
    %v568 = vpop.f32.mrf.mxu0
    %v569 = vadd.f32 0.0, %v568
    %570 = vmatmul.f32.gmra.mxu0 %v88
    %v571 = vpop.f32.mrf.mxu0
    %v572 = vadd.f32 0.0, %v571
    %573 = vmatmul.f32.gmra.mxu0 %v91
    %v574 = vpop.f32.mrf.mxu0
    %v575 = vadd.f32 0.0, %v574
    %576 = vdwg.mxu0
    %577 = vmatpush.msra.mxu0 0.0
    %578 = vmatpush.msra.mxu0 0.0
    %579 = vmatpush.msra.mxu0 0.0
    %580 = vmatpush.msra.mxu0 0.0
    %581 = vmatpush.msra.mxu0 0.0
    %582 = vmatpush.msra.mxu0 0.0
    %583 = vmatpush.msra.mxu0 0.0
    %584 = vmatpush.msra.mxu0 0.0
    %585 = vmatpush.msra.mxu0 0.0
    %586 = vmatpush.msra.mxu0 0.0
    %587 = vmatpush.msra.mxu0 0.0
    %588 = vmatpush.msra.mxu0 0.0
    %589 = vmatpush.msra.mxu0 0.0
    %590 = vmatpush.msra.mxu0 0.0
    %591 = vmatpush.msra.mxu0 0.0
    %592 = vmatpush.msra.mxu0 %v140
    %593 = vmatmul.f32.gmra.mxu0 %v82
    %v594 = vpop.f32.mrf.mxu0
    %v595 = vadd.f32 0.0, %v594
    %596 = vmatmul.f32.gmra.mxu0 %v85
    %v597 = vpop.f32.mrf.mxu0
    %v598 = vadd.f32 0.0, %v597
    %599 = vmatmul.f32.gmra.mxu0 %v88
    %v600 = vpop.f32.mrf.mxu0
    %v601 = vadd.f32 0.0, %v600
    %602 = vmatmul.f32.gmra.mxu0 %v91
    %v603 = vpop.f32.mrf.mxu0
    %v604 = vadd.f32 0.0, %v603
    %605 = vdwg.mxu0
    %v606 = vmax.f32 %v160, 0.0
    %v607 = vmax.f32 %v189, 0.0
    %v608 = vmax.f32 %v218, 0.0
    %v609 = vmax.f32 %v247, 0.0
    %v610 = vmax.f32 %v276, 0.0
    %v611 = vmax.f32 %v305, 0.0
    %v612 = vmax.f32 %v334, 0.0
    %v613 = vmax.f32 %v363, 0.0
    %v614 = vmax.f32 %v392, 0.0
    %v615 = vmax.f32 %v421, 0.0
    %v616 = vmax.f32 %v450, 0.0
    %v617 = vmax.f32 %v479, 0.0
    %v618 = vmax.f32 %v508, 0.0
    %v619 = vmax.f32 %v537, 0.0
    %v620 = vmax.f32 %v566, 0.0
    %v621 = vmax.f32 %v595, 0.0
    %v622 = vmax.f32 %v163, 0.0
    %v623 = vmax.f32 %v192, 0.0
    %v624 = vmax.f32 %v221, 0.0
    %v625 = vmax.f32 %v250, 0.0
    %v626 = vmax.f32 %v279, 0.0
    %v627 = vmax.f32 %v308, 0.0
    %v628 = vmax.f32 %v337, 0.0
    %v629 = vmax.f32 %v366, 0.0
    %v630 = vmax.f32 %v395, 0.0
    %v631 = vmax.f32 %v424, 0.0
    %v632 = vmax.f32 %v453, 0.0
    %v633 = vmax.f32 %v482, 0.0
    %v634 = vmax.f32 %v511, 0.0
    %v635 = vmax.f32 %v540, 0.0
    %v636 = vmax.f32 %v569, 0.0
    %v637 = vmax.f32 %v598, 0.0
    %v638 = vmax.f32 %v166, 0.0
    %v639 = vmax.f32 %v195, 0.0
    %v640 = vmax.f32 %v224, 0.0
    %v641 = vmax.f32 %v253, 0.0
    %v642 = vmax.f32 %v282, 0.0
    %v643 = vmax.f32 %v311, 0.0
    %v644 = vmax.f32 %v340, 0.0
    %v645 = vmax.f32 %v369, 0.0
    %v646 = vmax.f32 %v398, 0.0
    %v647 = vmax.f32 %v427, 0.0
    %v648 = vmax.f32 %v456, 0.0
    %v649 = vmax.f32 %v485, 0.0
    %v650 = vmax.f32 %v514, 0.0
    %v651 = vmax.f32 %v543, 0.0
    %v652 = vmax.f32 %v572, 0.0
    %v653 = vmax.f32 %v601, 0.0
    %v654 = vmax.f32 %v169, 0.0
    %v655 = vmax.f32 %v198, 0.0
    %v656 = vmax.f32 %v227, 0.0
    %v657 = vmax.f32 %v256, 0.0
    %v658 = vmax.f32 %v285, 0.0
    %v659 = vmax.f32 %v314, 0.0
    %v660 = vmax.f32 %v343, 0.0
    %v661 = vmax.f32 %v372, 0.0
    %v662 = vmax.f32 %v401, 0.0
    %v663 = vmax.f32 %v430, 0.0
    %v664 = vmax.f32 %v459, 0.0
    %v665 = vmax.f32 %v488, 0.0
    %v666 = vmax.f32 %v517, 0.0
    %v667 = vmax.f32 %v546, 0.0
    %v668 = vmax.f32 %v575, 0.0
    %v669 = vmax.f32 %v604, 0.0
    %v670 = vadd.f32 %v606, %v607
    %671 = vadd.xlane.f32.xlu0 %v670
    %v672 = vpop.xlane.xlu0 %671
    %v673 = vadd.f32 %v622, %v623
    %674 = vadd.xlane.f32.xlu0 %v673
    %v675 = vpop.xlane.xlu0 %674
    %v676 = vadd.f32 %v638, %v639
    %677 = vadd.xlane.f32.xlu0 %v676
    %v678 = vpop.xlane.xlu0 %677
    %v679 = vadd.f32 %v654, %v655
    %680 = vadd.xlane.f32.xlu0 %v679
    %v681 = vpop.xlane.xlu0 %680
    %v682 = vadd.f32 %v608, %v609
    %683 = vadd.xlane.f32.xlu0 %v682
    %v684 = vpop.xlane.xlu0 %683
    %v685 = vadd.f32 %v624, %v625
    %686 = vadd.xlane.f32.xlu0 %v685
    %v687 = vpop.xlane.xlu0 %686
    %v688 = vadd.f32 %v640, %v641
    %689 = vadd.xlane.f32.xlu0 %v688
    %v690 = vpop.xlane.xlu0 %689
    %v691 = vadd.f32 %v656, %v657
    %692 = vadd.xlane.f32.xlu0 %v691
    %v693 = vpop.xlane.xlu0 %692
    %v694 = vadd.f32 %v610, %v611
    %695 = vadd.xlane.f32.xlu0 %v694
    %v696 = vpop.xlane.xlu0 %695
    %v697 = vadd.f32 %v626, %v627
    %698 = vadd.xlane.f32.xlu0 %v697
    %v699 = vpop.xlane.xlu0 %698
    %v700 = vadd.f32 %v642, %v643
    %701 = vadd.xlane.f32.xlu0 %v700
    %v702 = vpop.xlane.xlu0 %701
    %v703 = vadd.f32 %v658, %v659
    %704 = vadd.xlane.f32.xlu0 %v703
    %v705 = vpop.xlane.xlu0 %704
    %v706 = vadd.f32 %v612, %v613
    %707 = vadd.xlane.f32.xlu0 %v706
    %v708 = vpop.xlane.xlu0 %707
    %v709 = vadd.f32 %v628, %v629
    %710 = vadd.xlane.f32.xlu0 %v709
    %v711 = vpop.xlane.xlu0 %710
    %v712 = vadd.f32 %v644, %v645
    %713 = vadd.xlane.f32.xlu0 %v712
    %v714 = vpop.xlane.xlu0 %713
    %v715 = vadd.f32 %v660, %v661
    %716 = vadd.xlane.f32.xlu0 %v715
    %v717 = vpop.xlane.xlu0 %716
    %v718 = vadd.f32 %v614, %v615
    %719 = vadd.xlane.f32.xlu0 %v718
    %v720 = vpop.xlane.xlu0 %719
    %v721 = vadd.f32 %v630, %v631
    %722 = vadd.xlane.f32.xlu0 %v721
    %v723 = vpop.xlane.xlu0 %722
    %v724 = vadd.f32 %v646, %v647
    %725 = vadd.xlane.f32.xlu0 %v724
    %v726 = vpop.xlane.xlu0 %725
    %v727 = vadd.f32 %v662, %v663
    %728 = vadd.xlane.f32.xlu0 %v727
    %v729 = vpop.xlane.xlu0 %728
    %v730 = vadd.f32 %v616, %v617
    %731 = vadd.xlane.f32.xlu0 %v730
    %v732 = vpop.xlane.xlu0 %731
    %v733 = vadd.f32 %v632, %v633
    %734 = vadd.xlane.f32.xlu0 %v733
    %v735 = vpop.xlane.xlu0 %734
    %v736 = vadd.f32 %v648, %v649
    %737 = vadd.xlane.f32.xlu0 %v736
    %v738 = vpop.xlane.xlu0 %737
    %v739 = vadd.f32 %v664, %v665
    %740 = vadd.xlane.f32.xlu0 %v739
    %v741 = vpop.xlane.xlu0 %740
    %v742 = vadd.f32 %v618, %v619
    %743 = vadd.xlane.f32.xlu0 %v742
    %v744 = vpop.xlane.xlu0 %743
    %v745 = vadd.f32 %v634, %v635
    %746 = vadd.xlane.f32.xlu0 %v745
    %v747 = vpop.xlane.xlu0 %746
    %v748 = vadd.f32 %v650, %v651
    %749 = vadd.xlane.f32.xlu0 %v748
    %v750 = vpop.xlane.xlu0 %749
    %v751 = vadd.f32 %v666, %v667
    %752 = vadd.xlane.f32.xlu0 %v751
    %v753 = vpop.xlane.xlu0 %752
    %v754 = vadd.f32 %v620, %v621
    %755 = vadd.xlane.f32.xlu0 %v754
    %v756 = vpop.xlane.xlu0 %755
    %v757 = vadd.f32 %v636, %v637
    %758 = vadd.xlane.f32.xlu0 %v757
    %v759 = vpop.xlane.xlu0 %758
    %v760 = vadd.f32 %v652, %v653
    %761 = vadd.xlane.f32.xlu0 %v760
    %v762 = vpop.xlane.xlu0 %761
    %v763 = vadd.f32 %v668, %v669
    %764 = vadd.xlane.f32.xlu0 %v763
    %v765 = vpop.xlane.xlu0 %764
    %vm766 = vcmask 7168
    %v767 = vsel %vm766, %v672, %v684
    %v768 = vsel %vm766, %v675, %v687
    %v769 = vsel %vm766, %v678, %v690
    %v770 = vsel %vm766, %v681, %v693
    %vm771 = vcmask 15360
    %v772 = vsel %vm771, %v767, %v696
    %v773 = vsel %vm771, %v768, %v699
    %v774 = vsel %vm771, %v769, %v702
    %v775 = vsel %vm771, %v770, %v705
    %vm776 = vcmask 23552
    %v777 = vsel %vm776, %v772, %v708
    %v778 = vsel %vm776, %v773, %v711
    %v779 = vsel %vm776, %v774, %v714
    %v780 = vsel %vm776, %v775, %v717
    %vm781 = vcmask 31744
    %v782 = vsel %vm781, %v777, %v720
    %v783 = vsel %vm781, %v778, %v723
    %v784 = vsel %vm781, %v779, %v726
    %v785 = vsel %vm781, %v780, %v729
    %v786 = vsel %vm80, %v782, %v732
    %v787 = vsel %vm80, %v783, %v735
    %v788 = vsel %vm80, %v784, %v738
    %v789 = vsel %vm80, %v785, %v741
    %vm790 = vcmask 48128
    %v791 = vsel %vm790, %v786, %v744
    %v792 = vsel %vm790, %v787, %v747
    %v793 = vsel %vm790, %v788, %v750
    %v794 = vsel %vm790, %v789, %v753
    %vm795 = vcmask 56320
    %v796 = vsel %vm795, %v791, %v756
    %v797 = vsel %vm795, %v792, %v759
    %v798 = vsel %vm795, %v793, %v762
    %v799 = vsel %vm795, %v794, %v765
    %v800 = vmul.f32 %v796, 0.00390625
    %v801 = vmul.f32 %v797, 0.00390625
    %v802 = vmul.f32 %v798, 0.00390625
    %v803 = vmul.f32 %v799, 0.00390625
    %v804 = vld [vmem:[#allocation5 + $0x20] sm:$0xff]
    %v805 = vld [vmem:[#allocation5 + $0x28] sm:$0xff]
    %v806 = vld [vmem:[#allocation5 + $0x30] sm:$0xff]
    %v807 = vld [vmem:[#allocation5 + $0x38] sm:$0xff]
    %v808 = vld [vmem:[#allocation5 + $0x100] sm:$0x1]
    %v809 = vperm.slane %v808, 0
    %810 = vxpose.xlu0.b32.start [1/16] %v800, 128
    %811 = vxpose.xlu0.b32.cont [2/16] %v801, 128
    %812 = vxpose.xlu0.b32.cont [3/16] %v802, 128
    %813 = vxpose.xlu0.b32.cont [4/16] %v803, 128
    %814 = vxpose.xlu0.b32.cont [5/16] 0.0, 128
    %815 = vxpose.xlu0.b32.cont [6/16] 0.0, 128
    %816 = vxpose.xlu0.b32.cont [7/16] 0.0, 128
    %817 = vxpose.xlu0.b32.cont [8/16] 0.0, 128
    %818 = vxpose.xlu0.b32.cont [9/16] 0.0, 128
    %819 = vxpose.xlu0.b32.cont [10/16] 0.0, 128
    %820 = vxpose.xlu0.b32.cont [11/16] 0.0, 128
    %821 = vxpose.xlu0.b32.cont [12/16] 0.0, 128
    %822 = vxpose.xlu0.b32.cont [13/16] 0.0, 128
    %823 = vxpose.xlu0.b32.cont [14/16] 0.0, 128
    %824 = vxpose.xlu0.b32.cont [15/16] 0.0, 128
    %825 = vxpose.xlu0.b32.end [16/16] 0.0, 128
    %v826 = vpop.trf.xlu0
    %v827 = vpop.trf.xlu0
    %v828 = vpop.trf.xlu0
    %v829 = vpop.trf.xlu0
    %v830 = vpop.trf.xlu0
    %v831 = vpop.trf.xlu0
    %v832 = vpop.trf.xlu0
    %v833 = vpop.trf.xlu0
    %v834 = vpop.trf.xlu0
    %v835 = vpop.trf.xlu0
    %v836 = vpop.trf.xlu0
    %v837 = vpop.trf.xlu0
    %v838 = vpop.trf.xlu0
    %v839 = vpop.trf.xlu0
    %v840 = vpop.trf.xlu0
    %v841 = vpop.trf.xlu0
    %vm842 = vcmask 261120
    %v844 = vsel %vm842, %v826, 0
    %846 = vmatpush.msra.mxu0 0.0
    %847 = vmatpush.msra.mxu0 0.0
    %848 = vmatpush.msra.mxu0 0.0
    %849 = vmatpush.msra.mxu0 0.0
    %850 = vmatpush.msra.mxu0 0.0
    %851 = vmatpush.msra.mxu0 0.0
    %852 = vmatpush.msra.mxu0 0.0
    %853 = vmatpush.msra.mxu0 0.0
    %854 = vmatpush.msra.mxu0 0.0
    %855 = vmatpush.msra.mxu0 0.0
    %856 = vmatpush.msra.mxu0 0.0
    %857 = vmatpush.msra.mxu0 0.0
    %858 = vmatpush.msra.mxu0 %v807
    %859 = vmatpush.msra.mxu0 %v806
    %860 = vmatpush.msra.mxu0 %v805
    %861 = vmatpush.msra.mxu0 %v804
    %862 = vmatmul.f32.gmra.mxu0 %v844
    %v863 = vpop.f32.mrf.mxu0
    %v864 = vadd.f32 %v809, %v863
    %865 = vdwg.mxu0
    %v866 = vld [vmem:[#allocation5 + $0x40] sm:$0xff]
    %v867 = vld [vmem:[#allocation5 + $0x48] sm:$0xff]
    %v868 = vld [vmem:[#allocation5 + $0x50] sm:$0xff]
    %v869 = vld [vmem:[#allocation5 + $0x58] sm:$0xff]
    %v870 = vld [vmem:[#allocation5 + $0x101] sm:$0x1]
    %v871 = vperm.slane %v870, 0
    %v873 = vsel %vm842, %v864, 0
    %875 = vmatpush.msra.mxu0 0.0
    %876 = vmatpush.msra.mxu0 0.0
    %877 = vmatpush.msra.mxu0 0.0
    %878 = vmatpush.msra.mxu0 0.0
    %879 = vmatpush.msra.mxu0 0.0
    %880 = vmatpush.msra.mxu0 0.0
    %881 = vmatpush.msra.mxu0 0.0
    %882 = vmatpush.msra.mxu0 0.0
    %883 = vmatpush.msra.mxu0 0.0
    %884 = vmatpush.msra.mxu0 0.0
    %885 = vmatpush.msra.mxu0 0.0
    %886 = vmatpush.msra.mxu0 0.0
    %887 = vmatpush.msra.mxu0 %v869
    %888 = vmatpush.msra.mxu0 %v868
    %889 = vmatpush.msra.mxu0 %v867
    %890 = vmatpush.msra.mxu0 %v866
    %891 = vmatmul.f32.gmra.mxu0 %v873
    %v892 = vpop.f32.mrf.mxu0
    %v893 = vadd.f32 %v871, %v892
    %894 = vdwg.mxu0
    %896 = vrot.lane.b32.xlu0 %v893, 96
    %v897 = vpop.permute.xlu0 %896
    %v898 = vsel %vm842, %v893, 0
    %v900 = vsel %vm842, %v897, 0
    %902 = vmatpush.xpose.msra.mxu0 0.0
    %903 = vmatpush.xpose.msra.mxu0 0.0
    %904 = vmatpush.xpose.msra.mxu0 0.0
    %905 = vmatpush.xpose.msra.mxu0 0.0
    %906 = vmatpush.xpose.msra.mxu0 0.0
    %907 = vmatpush.xpose.msra.mxu0 0.0
    %908 = vmatpush.xpose.msra.mxu0 0.0
    %909 = vmatpush.xpose.msra.mxu0 0.0
    %910 = vmatpush.xpose.msra.mxu0 0.0
    %911 = vmatpush.xpose.msra.mxu0 0.0
    %912 = vmatpush.xpose.msra.mxu0 0.0
    %913 = vmatpush.xpose.msra.mxu0 0.0
    %914 = vmatpush.xpose.msra.mxu0 0.0
    %915 = vmatpush.xpose.msra.mxu0 0.0
    %916 = vmatpush.xpose.msra.mxu0 0.0
    %917 = vmatpush.xpose.msra.mxu0 %v900
    %918 = vmatmul.f32.gmra.mxu0 %v898
    %v919 = vpop.f32.mrf.mxu0
    %v920 = vadd.f32 0.0, %v919
    %921 = vdwg.mxu0
    %v922 = vmul.f32 %v920, 0.17677669
    %v923 = vld [vmem:[#allocation7] sm:$0xff]
    %v924 = vadd.f32 %v922, %v923
    %vm925 = vcmask 64512
    %v926 = vsel %vm925, %v924, -inf
    %927 = vmax.xlane.f32.xlu0 %v926
    %v928 = vpop.xlane.xlu0 %927
    %v929 = vsub.f32 %v924, %v928
    %v930 = vmul.f32 %v929, 1.442695
    %v931 = vpow.pop %v930
    %v932 = vsel %vm925, %v931, 0.0
    %933 = vadd.xlane.f32.xlu0 %v932
    %v934 = vpop.xlane.xlu0 %933
    %v935 = vrcp.pop %v934
    %v936 = vmul.f32 %v934, %v935
    %v937 = vsub.f32 1.0, %v936
    %v938 = vmul.f32 %v935, %v937
    %v939 = vadd.f32 %v935, %v938
    %vm940 = vweird.f32 %v934
    %vm941 = vweird.f32 %v935
    %vm942 = vmor %vm940, %vm941
    %v943 = vsel %vm942, %v935, %v939
    %v944 = vand.u32 2147483647, %v934
    %vm945 = vcmp.eq.f32.partialorder %v944, 8.507059e+37
    %v946 = vand.u32 %v934, 2147483648
    %v947 = vor.u32 1.1754944e-38, %v946
    %v948 = vsel %vm945, %v947, %v943
    %v949 = vmul.f32 %v931, %v948
    %950 = vrot.lane.b32.xlu0 %v893, 64
    %v951 = vpop.permute.xlu0 %950
    %v954 = vsel %vm925, %v949, 0
    %956 = vmatpush.msra.mxu0 0.0
    %957 = vmatpush.msra.mxu0 0.0
    %958 = vmatpush.msra.mxu0 0.0
    %959 = vmatpush.msra.mxu0 0.0
    %960 = vmatpush.msra.mxu0 0.0
    %961 = vmatpush.msra.mxu0 0.0
    %962 = vmatpush.msra.mxu0 0.0
    %963 = vmatpush.msra.mxu0 0.0
    %964 = vmatpush.msra.mxu0 0.0
    %965 = vmatpush.msra.mxu0 0.0
    %966 = vmatpush.msra.mxu0 0.0
    %967 = vmatpush.msra.mxu0 0.0
    %968 = vmatpush.msra.mxu0 0.0
    %969 = vmatpush.msra.mxu0 0.0
    %970 = vmatpush.msra.mxu0 0.0
    %971 = vmatpush.msra.mxu0 %v951
    %972 = vmatmul.f32.gmra.mxu0 %v954
    %v973 = vpop.f32.mrf.mxu0
    %v974 = vadd.f32 0.0, %v973
    %975 = vdwg.mxu0
    %v976 = vld [vmem:[#allocation5 + $0x60] sm:$0xff]
    %v977 = vld [vmem:[#allocation5 + $0x68] sm:$0xff]
    %v978 = vld [vmem:[#allocation5 + $0x70] sm:$0xff]
    %v979 = vld [vmem:[#allocation5 + $0x78] sm:$0xff]
    %v980 = vld [vmem:[#allocation5 + $0x102] sm:$0x1]
    %v981 = vperm.slane %v980, 0
    %v983 = vsel %vm842, %v974, 0
    %985 = vmatpush.msra.mxu0 0.0
    %986 = vmatpush.msra.mxu0 0.0
    %987 = vmatpush.msra.mxu0 0.0
    %988 = vmatpush.msra.mxu0 0.0
    %989 = vmatpush.msra.mxu0 0.0
    %990 = vmatpush.msra.mxu0 0.0
    %991 = vmatpush.msra.mxu0 0.0
    %992 = vmatpush.msra.mxu0 0.0
    %993 = vmatpush.msra.mxu0 0.0
    %994 = vmatpush.msra.mxu0 0.0
    %995 = vmatpush.msra.mxu0 0.0
    %996 = vmatpush.msra.mxu0 0.0
    %997 = vmatpush.msra.mxu0 %v979
    %998 = vmatpush.msra.mxu0 %v978
    %999 = vmatpush.msra.mxu0 %v977
    %1000 = vmatpush.msra.mxu0 %v976
    %1001 = vmatmul.f32.gmra.mxu0 %v983
    %v1002 = vpop.f32.mrf.mxu0
    %v1003 = vadd.f32 %v981, %v1002
    %1004 = vdwg.mxu0
    %v1005 = vadd.f32 %v864, %v1003
    %v1006 = vld [vmem:[#allocation5 + $0x103] sm:$0x1]
    %v1007 = vld [vmem:[#allocation5 + $0x104] sm:$0x1]
    %v1008 = vsel %vm842, %v1005, 0.0
    %1009 = vadd.xlane.f32.xlu0 %v1008
    %v1010 = vpop.xlane.xlu0 %1009
    %v1011 = vrcp.pop 32.0
    %v1012 = vmul.f32 32.0, %v1011
    %v1013 = vsub.f32 1.0, %v1012
    %v1014 = vmul.f32 %v1011, %v1013
    %v1015 = vadd.f32 %v1011, %v1014
    %vm1016 = vweird.f32 %v1011
    %v1017 = vsel %vm1016, %v1011, %v1015
    %v1018 = vmul.f32 %v1010, %v1017
    %v1019 = vsub.f32 %v1005, %v1018
    %v1020 = vmul.f32 %v1019, %v1019
    %v1021 = vsel %vm842, %v1020, 0.0
    %1022 = vadd.xlane.f32.xlu0 %v1021
    %v1023 = vpop.xlane.xlu0 %1022
    %v1024 = vmul.f32 %v1023, %v1017
    %v1025 = vadd.f32 %v1024, 1e-05
    %v1026 = vrsqrt.pop %v1025
    %v1027 = vmul.f32 %v1026, %v1025
    %v1028 = vmul.f32 %v1027, %v1026
    %v1029 = vmul.f32 0.5, %v1028
    %v1030 = vsub.f32 1.5, %v1029
    %v1031 = vmul.f32 %v1026, %v1030
    %vm1032 = vweird.f32 %v1025
    %vm1033 = vweird.f32 %v1026
    %vm1034 = vmor %vm1032, %vm1033
    %v1035 = vsel %vm1034, %v1026, %v1031
    %v1036 = vmul.f32 %v1019, %v1035
    %v1037 = vperm.slane %v1006, 0
    %v1038 = vmul.f32 %v1036, %v1037
    %v1039 = vperm.slane %v1007, 0
    %v1040 = vadd.f32 %v1038, %v1039
    %v1041 = vld [vmem:[#allocation5 + $0x80] sm:$0xff]
    %v1042 = vld [vmem:[#allocation5 + $0x88] sm:$0xff]
    %v1043 = vld [vmem:[#allocation5 + $0x90] sm:$0xff]
    %v1044 = vld [vmem:[#allocation5 + $0x98] sm:$0xff]
    %v1045 = vld [vmem:[#allocation5 + $0x105] sm:$0x1]
    %v1046 = vperm.slane %v1045, 0
    %v1048 = vsel %vm842, %v1040, 0
    %1050 = vmatpush.msra.mxu0 0.0
    %1051 = vmatpush.msra.mxu0 0.0
    %1052 = vmatpush.msra.mxu0 0.0
    %1053 = vmatpush.msra.mxu0 0.0
    %1054 = vmatpush.msra.mxu0 0.0
    %1055 = vmatpush.msra.mxu0 0.0
    %1056 = vmatpush.msra.mxu0 0.0
    %1057 = vmatpush.msra.mxu0 0.0
    %1058 = vmatpush.msra.mxu0 0.0
    %1059 = vmatpush.msra.mxu0 0.0
    %1060 = vmatpush.msra.mxu0 0.0
    %1061 = vmatpush.msra.mxu0 0.0
    %1062 = vmatpush.msra.mxu0 %v1044
    %1063 = vmatpush.msra.mxu0 %v1043
    %1064 = vmatpush.msra.mxu0 %v1042
    %1065 = vmatpush.msra.mxu0 %v1041
    %1066 = vmatmul.f32.gmra.mxu0 %v1048
    %v1067 = vpop.f32.mrf.mxu0
    %v1068 = vadd.f32 %v1046, %v1067
    %1069 = vdwg.mxu0
    %v1070 = vmax.f32 %v1068, 0.0
    %v1071 = vld [vmem:[#allocation5 + $0xa0] sm:$0xff]
    %v1072 = vld [vmem:[#allocation5 + $0xa8] sm:$0xff]
    %v1073 = vld [vmem:[#allocation5 + $0xb0] sm:$0xff]
    %v1074 = vld [vmem:[#allocation5 + $0xb8] sm:$0xff]
    %v1075 = vld [vmem:[#allocation5 + $0xc0] sm:$0xff]
    %v1076 = vld [vmem:[#allocation5 + $0xc8] sm:$0xff]
    %v1077 = vld [vmem:[#allocation5 + $0xd0] sm:$0xff]
    %v1078 = vld [vmem:[#allocation5 + $0xd8] sm:$0xff]
    %v1079 = vld [vmem:[#allocation5 + $0x106] sm:$0x1]
    %v1080 = vperm.slane %v1079, 0
    %vm1081 = vcmask 523264
    %v1083 = vsel %vm1081, %v1070, 0
    %1085 = vmatpush.msra.mxu0 0.0
    %1086 = vmatpush.msra.mxu0 0.0
    %1087 = vmatpush.msra.mxu0 0.0
    %1088 = vmatpush.msra.mxu0 0.0
    %1089 = vmatpush.msra.mxu0 0.0
    %1090 = vmatpush.msra.mxu0 0.0
    %1091 = vmatpush.msra.mxu0 0.0
    %1092 = vmatpush.msra.mxu0 0.0
    %1093 = vmatpush.msra.mxu0 %v1078
    %1094 = vmatpush.msra.mxu0 %v1077
    %1095 = vmatpush.msra.mxu0 %v1076
    %1096 = vmatpush.msra.mxu0 %v1075
    %1097 = vmatpush.msra.mxu0 %v1074
    %1098 = vmatpush.msra.mxu0 %v1073
    %1099 = vmatpush.msra.mxu0 %v1072
    %1100 = vmatpush.msra.mxu0 %v1071
    %1101 = vmatmul.f32.gmra.mxu0 %v1083
    %v1102 = vpop.f32.mrf.mxu0
    %v1103 = vadd.f32 %v1080, %v1102
    %1104 = vdwg.mxu0
    %v1105 = vadd.f32 %v1040, %v1103
    %v1106 = vld [vmem:[#allocation5 + $0x107] sm:$0x1]
    %v1107 = vld [vmem:[#allocation5 + $0x108] sm:$0x1]
    %v1108 = vsel %vm842, %v1105, 0.0
    %1109 = vadd.xlane.f32.xlu0 %v1108
    %v1110 = vpop.xlane.xlu0 %1109
    %v1111 = vmul.f32 %v1110, %v1017
    %v1112 = vsub.f32 %v1105, %v1111
    %v1113 = vmul.f32 %v1112, %v1112
    %v1114 = vsel %vm842, %v1113, 0.0
    %1115 = vadd.xlane.f32.xlu0 %v1114
    %v1116 = vpop.xlane.xlu0 %1115
    %v1117 = vmul.f32 %v1116, %v1017
    %v1118 = vadd.f32 %v1117, 1e-05
    %v1119 = vrsqrt.pop %v1118
    %v1120 = vmul.f32 %v1119, %v1118
    %v1121 = vmul.f32 %v1120, %v1119
    %v1122 = vmul.f32 0.5, %v1121
    %v1123 = vsub.f32 1.5, %v1122
    %v1124 = vmul.f32 %v1119, %v1123
    %vm1125 = vweird.f32 %v1118
    %vm1126 = vweird.f32 %v1119
    %vm1127 = vmor %vm1125, %vm1126
    %v1128 = vsel %vm1127, %v1119, %v1124
    %v1129 = vmul.f32 %v1112, %v1128
    %v1130 = vperm.slane %v1106, 0
    %v1131 = vmul.f32 %v1129, %v1130
    %v1132 = vperm.slane %v1107, 0
    %v1133 = vadd.f32 %v1131, %v1132
    %v1134 = vld [vmem:[#allocation7 + $0x8] sm:$0xff]
    %v1136 = vsel %vm925, %v1134, 0
    %1138 = vmatpush.msra.mxu0 0.0
    %1139 = vmatpush.msra.mxu0 0.0
    %1140 = vmatpush.msra.mxu0 0.0
    %1141 = vmatpush.msra.mxu0 0.0
    %1142 = vmatpush.msra.mxu0 0.0
    %1143 = vmatpush.msra.mxu0 0.0
    %1144 = vmatpush.msra.mxu0 0.0
    %1145 = vmatpush.msra.mxu0 0.0
    %1146 = vmatpush.msra.mxu0 0.0
    %1147 = vmatpush.msra.mxu0 0.0
    %1148 = vmatpush.msra.mxu0 0.0
    %1149 = vmatpush.msra.mxu0 0.0
    %1150 = vmatpush.msra.mxu0 0.0
    %1151 = vmatpush.msra.mxu0 0.0
    %1152 = vmatpush.msra.mxu0 0.0
    %1153 = vmatpush.msra.mxu0 %v1133
    %1154 = vmatmul.f32.gmra.mxu0 %v1136
    %v1155 = vpop.f32.mrf.mxu0
    %v1156 = vadd.f32 0.0, %v1155
    %1157 = vdwg.mxu0
    %v1158 = vld [vmem:[#allocation5 + $0xe0] sm:$0xff]
    %v1159 = vld [vmem:[#allocation5 + $0xe8] sm:$0xff]
    %v1160 = vld [vmem:[#allocation5 + $0xf0] sm:$0xff]
    %v1161 = vld [vmem:[#allocation5 + $0xf8] sm:$0xff]
    %v1162 = vld [vmem:[#allocation5 + $0x109] sm:$0x1]
    %v1163 = vperm.slane %v1162, 0
    %v1165 = vsel %vm842, %v1156, 0
    %1167 = vmatpush.msra.mxu0 0.0
    %1168 = vmatpush.msra.mxu0 0.0
    %1169 = vmatpush.msra.mxu0 0.0
    %1170 = vmatpush.msra.mxu0 0.0
    %1171 = vmatpush.msra.mxu0 0.0
    %1172 = vmatpush.msra.mxu0 0.0
    %1173 = vmatpush.msra.mxu0 0.0
    %1174 = vmatpush.msra.mxu0 0.0
    %1175 = vmatpush.msra.mxu0 0.0
    %1176 = vmatpush.msra.mxu0 0.0
    %1177 = vmatpush.msra.mxu0 0.0
    %1178 = vmatpush.msra.mxu0 0.0
    %1179 = vmatpush.msra.mxu0 %v1161
    %1180 = vmatpush.msra.mxu0 %v1160
    %1181 = vmatpush.msra.mxu0 %v1159
    %1182 = vmatpush.msra.mxu0 %v1158
    %1183 = vmatmul.f32.gmra.mxu0 %v1165
    %v1184 = vpop.f32.mrf.mxu0
    %v1185 = vadd.f32 %v1163, %v1184
    %1186 = vdwg.mxu0
    %1187 = vst [vmem:[#allocation8] sm:$0xff] %v1185
    // Predicated region
    $region26: #{tpu_custom_call.1} parent=1 // pred_check
      _
    $region27: #{tpu_custom_call.1} parent=1 // pred_check_branch
      %1189 = sbr.rel (0) target = $region29
    $region28: #{tpu_custom_call.1} parent=1 // pred_region
      %1191 = vsyncadd [#allocation4], 0
      %s1193 = sshll.u32 [#allocation8], 4
      %s1194 = int_to_ptr.vmem [resolvable:$true] %s1193
      %s1195 = sshll.u32 %s3, 4
      %s1196 = int_to_ptr.hbm [resolvable:$true] %s1195
      %1198 = dma.vmem_to_hbm [thread:$0]  %s1194, 128, %s1196, [#allocation4]
    $region29: #{tpu_custom_call.1} parent=1 // pred_fallthru
      _
    // Predicated region
    $region30: #{tpu_custom_call.1} parent=1 // pred_check
      _
    $region31: #{tpu_custom_call.1} parent=1 // pred_check_branch
      %1200 = sbr.rel (0) target = $region33
    $region32: #{tpu_custom_call.1} parent=1 // pred_region
      %1202 = dma.done [#allocation4], 128
    $region33: #{tpu_custom_call.1} parent=1 // pred_fallthru
      _
    %1203 = vsyncpa [#allocation3], 1
    %1204 = vsyncpa [#allocation6], 1
    %1205 = vsyncpa [#allocation4], 1

</llo_original>
